<compile_context>
chip_gen: v7x
topology: tpu7x:2x2x1
jax: 0.10.0
libtpu: 0.0.40
codegen_flags: <defaults>
</compile_context>

<pallas_src>
import math
import functools

import numpy as np
import jax
import jax.numpy as jnp
from jax.experimental import pallas as pl
from jax.experimental.pallas import tpu as pltpu


def _round_up(x, mult):
    return ((x + mult - 1) // mult) * mult


def _vmem_limit_bytes():
    """Scoped-VMEM budget: <= 3/4 of physical per-core VMEM, capped at 48 MiB
    (safe headroom on 64-MiB v7x parts; our per-step working set is ~1 MB)."""
    limit = 48 * 1024 * 1024
    try:
        cap = int(pltpu.get_tpu_info().vmem_capacity_bytes)
        limit = min(limit, (cap * 3) // 4)
    except Exception:
        pass
    return limit


def pad_last(x, mult=128):
    d = x.shape[-1]
    dp = _round_up(d, mult)
    if dp == d:
        return x
    pads = [(0, 0)] * (x.ndim - 1) + [(0, dp - d)]
    return jnp.pad(x, pads)


# ----------------------------------------------------------------------------
# Glue: PyTorch nn.Unfold semantics on NCHW input (pure data rearrangement)
# ----------------------------------------------------------------------------
def unfold_nchw(x, k, s, p):
    """nn.Unfold(kernel_size=(k,k), stride=(s,s), padding=(p,p)) -> (B, C*k*k, L)."""
    B, C, H, W = x.shape
    xp = jnp.pad(x, ((0, 0), (0, 0), (p, p), (p, p)))
    Ho = (H + 2 * p - k) // s + 1
    Wo = (W + 2 * p - k) // s + 1
    cols = []
    for i in range(k):
        for j in range(k):
            cols.append(xp[:, :, i:i + (Ho - 1) * s + 1:s, j:j + (Wo - 1) * s + 1:s])
    patches = jnp.stack(cols, axis=2)            # (B, C, k*k, Ho, Wo)
    return patches.reshape(B, C * k * k, Ho * Wo)


# ----------------------------------------------------------------------------
# In-kernel helpers (all f32)
# ----------------------------------------------------------------------------
def _layernorm(x, w, b, d_true, n_pad, eps=1e-5):
    """LayerNorm over last axis.  d_true = true feature count, n_pad = count of
    zero-padded trailing lanes (their (0-mu)^2 term is subtracted so the
    two-pass variance stays exact without a lane mask)."""
    inv_d = 1.0 / float(d_true)
    mu = jnp.sum(x, axis=-1, keepdims=True) * inv_d
    xc = x - mu
    ss = jnp.sum(xc * xc, axis=-1, keepdims=True)
    if n_pad:
        ss = ss - float(n_pad) * (mu * mu)
    var = jnp.maximum(ss * inv_d, 0.0)
    return xc * jax.lax.rsqrt(var + eps) * w + b


def _erf(x):
    # Abramowitz & Stegun 7.1.26, max abs error ~1.5e-7; exp -> EUP, rest VPU.
    a1, a2, a3, a4, a5 = 0.254829592, -0.284496736, 1.421413741, -1.453152027, 1.061405429
    p = 0.3275911
    ax = jnp.abs(x)
    t = 1.0 / (1.0 + p * ax)
    poly = ((((a5 * t + a4) * t + a3) * t + a2) * t + a1) * t
    y = 1.0 - poly * jnp.exp(-ax * ax)
    return jnp.where(x >= 0.0, y, -y)


def _gelu_exact(x):
    return 0.5 * x * (1.0 + _erf(x * (1.0 / math.sqrt(2.0))))


# ----------------------------------------------------------------------------
# Pallas kernels
# ----------------------------------------------------------------------------
def performer_kernel(x_ref, n1_ref, kqvw_ref, bias_ref, w2_ref, vp_ref, o_ref,
                     ksum_acc, kptv_acc, *, emb, m, d_true, t_true, tile_t):
    """Token_performer block, two-pass over token tiles.

    grid = (B, phase, T_tiles):
      phase 0: accumulate kp_sum (1,m) and kp^T v (m,emb) into VMEM scratch.
      phase 1: re-stream tiles, compute qp / attention / proj / MLP, write out.
    """
    phase = pl.program_id(1)
    tidx = pl.program_id(2)

    dim_pad = x_ref.shape[-1]
    x = x_ref[...].astype(jnp.float32)                          # (tile_t, dim_pad)

    # norm1 (gamma/beta rows are zero on padded lanes -> padded lanes stay 0)
    xn = _layernorm(x, n1_ref[0:1, :], n1_ref[1:2, :], d_true, dim_pad - d_true)

    # one fused lane-dense MXU matmul: [k | q | v | k@w^T | q@w^T], f32 accum,
    # plus a single pre-packed bias row.
    kqv = jnp.dot(xn.astype(jnp.bfloat16), kqvw_ref[...],
                  preferred_element_type=jnp.float32) + bias_ref[...]
    k = kqv[:, 0:emb]
    q = kqv[:, emb:2 * emb]
    v = kqv[:, 2 * emb:3 * emb]
    wtz_k = kqv[:, 3 * emb:3 * emb + m]
    wtz_q = kqv[:, 3 * emb + m:3 * emb + 2 * m]

    inv_sqrt_m = 1.0 / math.sqrt(m)

    @pl.when(jnp.logical_and(phase == 0, tidx == 0))
    def _():
        ksum_acc[...] = jnp.zeros_like(ksum_acc)
        kptv_acc[...] = jnp.zeros_like(kptv_acc)

    @pl.when(phase == 0)
    def _():
        zd_k = 0.5 * jnp.sum(k * k, axis=-1, keepdims=True)
        kp = jnp.exp(wtz_k - zd_k) * inv_sqrt_m                 # (tile_t, m) f32
        # mask zero-padded token rows so they don't pollute the global sums
        rows = jax.lax.broadcasted_iota(jnp.int32, kp.shape, 0)
        kp = jnp.where(rows < (t_true - tidx * tile_t), kp, 0.0)
        ksum_acc[...] += jnp.sum(kp, axis=0, keepdims=True)
        kptv_acc[...] += jax.lax.dot_general(                   # kp^T @ v, f32
            kp, v, dimension_numbers=(((0,), (0,)), ((), ())),
            preferred_element_type=jnp.float32)

    @pl.when(phase == 1)
    def _():
        zd_q = 0.5 * jnp.sum(q * q, axis=-1, keepdims=True)
        qp = jnp.exp(wtz_q - zd_q) * inv_sqrt_m                 # (tile_t, m) f32
        D = jnp.sum(qp * ksum_acc[...], axis=-1, keepdims=True)  # (tile_t, 1)
        attn = jnp.dot(qp, kptv_acc[...],
                       preferred_element_type=jnp.float32)      # (tile_t, emb) f32
        attn = attn / (D + 1e-8)                                # exact divide (parity)

        pw = w2_ref[0:emb, :]                                   # sublane (row) slices
        m1w = w2_ref[emb:2 * emb, :]
        m2w = w2_ref[2 * emb:3 * emb, :]
        vp = vp_ref[...]                                        # (8, emb) f32
        pb, n2w, n2b, m1b, m2b = vp[0:1], vp[1:2], vp[2:3], vp[3:4], vp[4:5]

        # skip connection uses v (dropout = identity in eval mode)
        y = v + (jnp.dot(attn.astype(jnp.bfloat16), pw,
                         preferred_element_type=jnp.float32) + pb)

        # MLP branch: norm2 -> Linear -> GELU(exact erf) -> Linear, residual
        yn = _layernorm(y, n2w, n2b, emb, 0)
        h = jnp.dot(yn.astype(jnp.bfloat16), m1w,
                    preferred_element_type=jnp.float32) + m1b
        h = _gelu_exact(h)
        h = jnp.dot(h.astype(jnp.bfloat16), m2w,
                    preferred_element_type=jnp.float32) + m2b

        o_ref[...] = (y + h).astype(o_ref.dtype)


def linear_kernel(x_ref, w_ref, b_ref, o_ref):
    o_ref[...] = (jnp.dot(x_ref[...], w_ref[...],
                          preferred_element_type=jnp.float32)
                  + b_ref[...]).astype(o_ref.dtype)


# ----------------------------------------------------------------------------
# Wrappers
# ----------------------------------------------------------------------------
def token_performer(tokens, pk, tile_t_cap=512):
    """tokens: (B, T, dim_pad) bf16 (zero-padded channels) -> (B, T, emb) bf16."""
    B, T, dim_pad = tokens.shape
    assert dim_pad == pk["dim_pad"], (dim_pad, pk["dim_pad"])
    emb, m, d_true = pk["emb"], pk["m"], pk["dim_true"]

    tile_t = min(tile_t_cap, _round_up(T, 8))
    T_pad = _round_up(T, tile_t)
    if T_pad != T:
        tokens = jnp.pad(tokens, ((0, 0), (0, T_pad - T), (0, 0)))
    n_tiles = T_pad // tile_t

    weights = (pk["n1"], pk["kqvw"], pk["bias"], pk["w2"], pk["vp"])
    kernel = functools.partial(performer_kernel, emb=emb, m=m, d_true=int(d_true),
                               t_true=int(T), tile_t=int(tile_t))
    out = pl.pallas_call(
        kernel,
        out_shape=jax.ShapeDtypeStruct((B, T_pad, emb), jnp.bfloat16),
        grid=(B, 2, n_tiles),
        in_specs=[pl.BlockSpec((None, tile_t, dim_pad), lambda b, p, t: (b, t, 0))]
                 + [pl.BlockSpec(w.shape, lambda b, p, t: (0, 0)) for w in weights],
        # phase 0 never writes the output; keep its block index parked at 0 so
        # each output block is written back to HBM exactly once (during phase 1).
        out_specs=pl.BlockSpec((None, tile_t, emb), lambda b, p, t: (b, t * p, 0)),
        scratch_shapes=[pltpu.VMEM((1, m), jnp.float32),
                        pltpu.VMEM((m, emb), jnp.float32)],
        compiler_params=pltpu.CompilerParams(
            dimension_semantics=("parallel", "arbitrary", "arbitrary"),
            vmem_limit_bytes=_vmem_limit_bytes()),
    )(tokens, *weights)
    return out[:, :T, :]


def project_linear(x2d_bf16, w_bf16, b_f32, tile_m=512):
    """Row-tiled projection: (N, K) bf16 @ (K, E) bf16 + b -> (N, E) f32."""
    N, K = x2d_bf16.shape
    E = w_bf16.shape[1]
    tm = min(N, tile_m)
    N_pad = _round_up(N, tm)
    if N_pad != N:
        x2d_bf16 = jnp.pad(x2d_bf16, ((0, N_pad - N), (0, 0)))
    out = pl.pallas_call(
        linear_kernel,
        out_shape=jax.ShapeDtypeStruct((N_pad, E), jnp.float32),
        grid=(N_pad // tm,),
        in_specs=[pl.BlockSpec((tm, K), lambda i: (i, 0)),
                  pl.BlockSpec((K, E), lambda i: (0, 0)),
                  pl.BlockSpec((1, E), lambda i: (0, 0))],
        out_specs=pl.BlockSpec((tm, E), lambda i: (i, 0)),
        compiler_params=pltpu.CompilerParams(
            dimension_semantics=("parallel",),
            vmem_limit_bytes=_vmem_limit_bytes()),
    )(x2d_bf16, w_bf16, b_f32)
    return out[:N]


# ----------------------------------------------------------------------------
# Parameter init (deterministic, synthetic) + packing for the kernels
# ----------------------------------------------------------------------------
def init_performer_params(key, dim, emb, kernel_ratio=0.5):
    m = int(emb * kernel_ratio)
    ks = jax.random.split(key, 10)
    std = 0.02
    kw = jax.random.normal(ks[0], (dim, emb), jnp.float32) * std
    qw = jax.random.normal(ks[1], (dim, emb), jnp.float32) * std
    vw = jax.random.normal(ks[2], (dim, emb), jnp.float32) * std
    kb = jax.random.normal(ks[3], (emb,), jnp.float32) * 0.01
    qb = jax.random.normal(ks[4], (emb,), jnp.float32) * 0.01
    vb = jax.random.normal(ks[5], (emb,), jnp.float32) * 0.01
    pw = jax.random.normal(ks[6], (emb, emb), jnp.float32) * std
    pb = jnp.zeros((emb,), jnp.float32)
    n1w = jnp.ones((dim,), jnp.float32)
    n1b = jnp.zeros((dim,), jnp.float32)
    n2w = jnp.ones((emb,), jnp.float32)
    n2b = jnp.zeros((emb,), jnp.float32)
    m1w = jax.random.normal(ks[7], (emb, emb), jnp.float32) * std
    m1b = jnp.zeros((emb,), jnp.float32)
    m2w = jax.random.normal(ks[8], (emb, emb), jnp.float32) * std
    m2b = jnp.zeros((emb,), jnp.float32)

    # non-trainable orthogonal random-feature matrix w (m, emb) * sqrt(m);
    # the kernel consumes w^T.  QR done host-side (numpy) for portability.
    g = np.asarray(jax.random.normal(ks[9], (emb, m), jnp.float32), dtype=np.float64)
    qmat, _ = np.linalg.qr(g)                                  # (emb, m), orthonormal cols
    wrf_t = jnp.asarray(qmat, jnp.float32) * math.sqrt(m)      # = w^T, (emb, m)

    # ---- pack into kernel-ready slabs ---------------------------------------
    dim_pad = _round_up(dim, 128)
    # fold the RF projection into the kqv matmul: x @ [kw|qw|vw|kw@w^T|qw@w^T]
    kqvw = jnp.concatenate([kw, qw, vw, kw @ wrf_t, qw @ wrf_t], axis=1)
    kqvw = jnp.pad(kqvw, ((0, dim_pad - dim), (0, 0))).astype(jnp.bfloat16)
    bias = jnp.concatenate([kb, qb, vb, kb @ wrf_t, qb @ wrf_t])[None, :]   # (1, 3e+2m) f32
    n1 = jnp.pad(jnp.stack([n1w, n1b], axis=0), ((0, 0), (0, dim_pad - dim)))
    w2 = jnp.concatenate([pw, m1w, m2w], axis=0).astype(jnp.bfloat16)       # (3e, e)
    zeros = jnp.zeros((emb,), jnp.float32)
    vp = jnp.stack([pb, n2w, n2b, m1b, m2b, zeros, zeros, zeros], axis=0)   # (8, e) f32
    return dict(kqvw=kqvw, n1=n1, bias=bias, w2=w2, vp=vp,
                emb=emb, m=m, dim_true=dim, dim_pad=dim_pad)


def init_t2t_params(key, in_chans, token_dim, embed_dim):
    k1, k2, k3 = jax.random.split(key, 3)
    attn1 = init_performer_params(k1, in_chans * 7 * 7, token_dim)
    attn2 = init_performer_params(k2, token_dim * 3 * 3, token_dim)
    k_proj = token_dim * 3 * 3
    k_proj_pad = _round_up(k_proj, 128)
    proj_w = jax.random.normal(k3, (k_proj, embed_dim), jnp.float32) * 0.02
    proj_w = jnp.pad(proj_w, ((0, k_proj_pad - k_proj), (0, 0))).astype(jnp.bfloat16)
    proj_b = jnp.zeros((1, embed_dim), jnp.float32)
    return dict(attn1=attn1, attn2=attn2, proj_w=proj_w, proj_b=proj_b)


# ----------------------------------------------------------------------------
# T2T_module forward (tokens_type='performer')
# ----------------------------------------------------------------------------
def t2t_forward(x, params):
    x = x.astype(jnp.bfloat16)                                # bf16 activations e2e

    # soft_split0: Unfold(7, stride 4, pad 2); tokens-first; pad channels to 128k
    t = unfold_nchw(x, 7, 4, 2).transpose(0, 2, 1)            # (B, L0, 3*49)
    t = pad_last(t, 128)                                      # (B, L0, 256)
    t = token_performer(t, params["attn1"])                   # (B, L0, token_dim) bf16

    B, L0, C = t.shape
    s0 = int(np.sqrt(L0))
    assert s0 * s0 == L0, (s0, L0)
    img = t.transpose(0, 2, 1).reshape(B, C, s0, s0)
    t = unfold_nchw(img, 3, 2, 1).transpose(0, 2, 1)          # (B, L1, C*9)
    t = pad_last(t, 128)                                      # (B, L1, 640)
    t = token_performer(t, params["attn2"])                   # (B, L1, token_dim) bf16

    B, L1, C = t.shape
    s1 = int(np.sqrt(L1))
    assert s1 * s1 == L1, (s1, L1)
    img = t.transpose(0, 2, 1).reshape(B, C, s1, s1)
    t = unfold_nchw(img, 3, 2, 1).transpose(0, 2, 1)          # (B, L2, C*9)
    t = pad_last(t, 128)                                      # (B, L2, 640)

    B, L2, Cp = t.shape
    out = project_linear(t.reshape(B * L2, Cp),
                         params["proj_w"], params["proj_b"])  # (B*L2, embed_dim) f32
    return out.reshape(B, L2, -1)


# ----------------------------------------------------------------------------
if __name__ == "__main__":
    img_size, in_chans, token_dim, embed_dim = 16, 3, 64, 128
    B = 2

    key = jax.random.PRNGKey(0)
    kx, kp = jax.random.split(key)
    x = jax.random.normal(kx, (B, in_chans, img_size, img_size), jnp.float32)
    params = init_t2t_params(kp, in_chans, token_dim, embed_dim)

    out = jax.block_until_ready(t2t_forward(x, params))

    num_patches = (img_size // 16) * (img_size // 16)          # total stride 4*2*2
    assert out.shape == (B, num_patches, embed_dim), out.shape
    assert bool(jnp.all(jnp.isfinite(out)))
    print("KERNEL_OK")
</pallas_src>

<mosaic_0001>
module attributes {stable_mosaic.version = 11 : i64} {
  func.func @performer_kernel(%arg0: i32, %arg1: i32, %arg2: i32, %arg3: memref<1x16x256xbf16, #tpu.memory_space<vmem>>, %arg4: memref<2x256xf32, #tpu.memory_space<vmem>>, %arg5: memref<256x256xbf16, #tpu.memory_space<vmem>>, %arg6: memref<1x256xf32, #tpu.memory_space<vmem>>, %arg7: memref<192x64xbf16, #tpu.memory_space<vmem>>, %arg8: memref<8x64xf32, #tpu.memory_space<vmem>>, %arg9: memref<1x16x64xbf16, #tpu.memory_space<vmem>>, %arg10: memref<1x32xf32, #tpu.memory_space<vmem>>, %arg11: memref<32x64xf32, #tpu.memory_space<vmem>>) attributes {dimension_semantics = [#tpu.dimension_semantics<parallel>, #tpu.dimension_semantics<arbitrary>, #tpu.dimension_semantics<arbitrary>], iteration_bounds = array<i64: 2, 2, 1>, scalar_prefetch = 0 : i64, scratch_operands = 2 : i64, tpu.core_type = #tpu.core_type<tc>, window_params = [{transform_indices = @transform_0, window_bounds = array<i64: 1, 16, 256>}, {pipeline_mode = #tpu.pipeline_mode<synchronous>, transform_indices = @transform_1, window_bounds = array<i64: 2, 256>}, {pipeline_mode = #tpu.pipeline_mode<synchronous>, transform_indices = @transform_2, window_bounds = array<i64: 256, 256>}, {pipeline_mode = #tpu.pipeline_mode<synchronous>, transform_indices = @transform_3, window_bounds = array<i64: 1, 256>}, {pipeline_mode = #tpu.pipeline_mode<synchronous>, transform_indices = @transform_4, window_bounds = array<i64: 192, 64>}, {pipeline_mode = #tpu.pipeline_mode<synchronous>, transform_indices = @transform_5, window_bounds = array<i64: 8, 64>}, {transform_indices = @transform_6, window_bounds = array<i64: 1, 16, 64>}]} {
    %c0 = arith.constant 0 : index
    %c0_0 = arith.constant 0 : index
    %c0_1 = arith.constant 0 : index
    %0 = vector.load %arg3[%c0, %c0_0, %c0_1] : memref<1x16x256xbf16, #tpu.memory_space<vmem>>, vector<1x16x256xbf16>
    %1 = vector.shape_cast %0 : vector<1x16x256xbf16> to vector<16x256xbf16>
    %2 = arith.extf %1 : vector<16x256xbf16> to vector<16x256xf32>
    %c0_2 = arith.constant 0 : index
    %c0_3 = arith.constant 0 : index
    %3 = vector.load %arg4[%c0_2, %c0_3] : memref<2x256xf32, #tpu.memory_space<vmem>>, vector<1x256xf32>
    %c1 = arith.constant 1 : index
    %c0_4 = arith.constant 0 : index
    %4 = vector.load %arg4[%c1, %c0_4] : memref<2x256xf32, #tpu.memory_space<vmem>>, vector<1x256xf32>
    %cst = arith.constant dense<0.000000e+00> : vector<16xf32>
    %5 = vector.multi_reduction <add>, %2, %cst [1] : vector<16x256xf32> to vector<16xf32>
    %6 = vector.shape_cast %5 : vector<16xf32> to vector<16x1xf32>
    %cst_5 = arith.constant 0.00680272094 : f32
    %7 = vector.broadcast %cst_5 : f32 to vector<16x1xf32>
    %8 = arith.mulf %6, %7 : vector<16x1xf32>
    %9 = vector.broadcast %8 : vector<16x1xf32> to vector<16x256xf32>
    %10 = arith.subf %2, %9 : vector<16x256xf32>
    %11 = arith.mulf %10, %10 : vector<16x256xf32>
    %cst_6 = arith.constant dense<0.000000e+00> : vector<16xf32>
    %12 = vector.multi_reduction <add>, %11, %cst_6 [1] : vector<16x256xf32> to vector<16xf32>
    %13 = vector.shape_cast %12 : vector<16xf32> to vector<16x1xf32>
    %14 = arith.mulf %8, %8 : vector<16x1xf32>
    %cst_7 = arith.constant 1.090000e+02 : f32
    %15 = vector.broadcast %cst_7 : f32 to vector<16x1xf32>
    %16 = arith.mulf %15, %14 : vector<16x1xf32>
    %17 = arith.subf %13, %16 : vector<16x1xf32>
    %cst_8 = arith.constant 0.00680272094 : f32
    %18 = vector.broadcast %cst_8 : f32 to vector<16x1xf32>
    %19 = arith.mulf %17, %18 : vector<16x1xf32>
    %cst_9 = arith.constant 0.000000e+00 : f32
    %20 = vector.broadcast %cst_9 : f32 to vector<16x1xf32>
    %21 = arith.maximumf %19, %20 : vector<16x1xf32>
    %cst_10 = arith.constant 9.99999974E-6 : f32
    %22 = vector.broadcast %cst_10 : f32 to vector<16x1xf32>
    %23 = arith.addf %21, %22 : vector<16x1xf32>
    %24 = math.rsqrt %23 : vector<16x1xf32>
    %25 = vector.broadcast %24 : vector<16x1xf32> to vector<16x256xf32>
    %26 = arith.mulf %10, %25 : vector<16x256xf32>
    %27 = vector.broadcast %3 : vector<1x256xf32> to vector<16x256xf32>
    %28 = arith.mulf %26, %27 : vector<16x256xf32>
    %29 = vector.broadcast %4 : vector<1x256xf32> to vector<16x256xf32>
    %30 = arith.addf %28, %29 : vector<16x256xf32>
    %31 = arith.truncf %30 : vector<16x256xf32> to vector<16x256xbf16>
    %c0_11 = arith.constant 0 : index
    %c0_12 = arith.constant 0 : index
    %32 = vector.load %arg5[%c0_11, %c0_12] : memref<256x256xbf16, #tpu.memory_space<vmem>>, vector<256x256xbf16>
    %cst_13 = arith.constant dense<0.000000e+00> : vector<16x256xf32>
    %33 = tpu.matmul %31, %32, %cst_13 {dimension_numbers = #tpu.dot_dimension_numbers<[1], [0], [0], [1], [0, 0, 1, 1], [], []>} : vector<16x256xbf16>, vector<256x256xbf16>, vector<16x256xf32> -> vector<16x256xf32>
    %c0_14 = arith.constant 0 : index
    %c0_15 = arith.constant 0 : index
    %34 = vector.load %arg6[%c0_14, %c0_15] : memref<1x256xf32, #tpu.memory_space<vmem>>, vector<1x256xf32>
    %35 = vector.broadcast %34 : vector<1x256xf32> to vector<16x256xf32>
    %36 = arith.addf %33, %35 : vector<16x256xf32>
    %37 = vector.extract_strided_slice %36 {offsets = [0, 0], sizes = [16, 64], strides = [1, 1]} : vector<16x256xf32> to vector<16x64xf32>
    %38 = vector.extract_strided_slice %36 {offsets = [0, 64], sizes = [16, 64], strides = [1, 1]} : vector<16x256xf32> to vector<16x64xf32>
    %39 = vector.extract_strided_slice %36 {offsets = [0, 128], sizes = [16, 64], strides = [1, 1]} : vector<16x256xf32> to vector<16x64xf32>
    %40 = vector.extract_strided_slice %36 {offsets = [0, 192], sizes = [16, 32], strides = [1, 1]} : vector<16x256xf32> to vector<16x32xf32>
    %41 = vector.extract_strided_slice %36 {offsets = [0, 224], sizes = [16, 32], strides = [1, 1]} : vector<16x256xf32> to vector<16x32xf32>
    %c0_i32 = arith.constant 0 : i32
    %42 = arith.cmpi eq, %arg1, %c0_i32 : i32
    %c0_i32_16 = arith.constant 0 : i32
    %43 = arith.cmpi eq, %arg2, %c0_i32_16 : i32
    %44 = arith.andi %42, %43 : i1
    %45 = arith.extui %44 : i1 to i32
    %c0_i32_17 = arith.constant 0 : i32
    %46 = arith.cmpi ne, %45, %c0_i32_17 : i32
    scf.if %46 {
      %cst_21 = arith.constant 0.000000e+00 : f32
      %53 = vector.broadcast %cst_21 : f32 to vector<1x32xf32>
      %c0_22 = arith.constant 0 : index
      %c0_23 = arith.constant 0 : index
      %54 = vector.load %arg10[%c0_22, %c0_23] : memref<1x32xf32, #tpu.memory_space<vmem>>, vector<1x32xf32>
      tpu.vector_store %arg10[%c0_22, %c0_23], %53 {strides = array<i32>} : memref<1x32xf32, #tpu.memory_space<vmem>>, vector<1x32xf32>,
      %cst_24 = arith.constant 0.000000e+00 : f32
      %55 = vector.broadcast %cst_24 : f32 to vector<32x64xf32>
      %c0_25 = arith.constant 0 : index
      %c0_26 = arith.constant 0 : index
      %56 = vector.load %arg11[%c0_25, %c0_26] : memref<32x64xf32, #tpu.memory_space<vmem>>, vector<32x64xf32>
      tpu.vector_store %arg11[%c0_25, %c0_26], %55 {strides = array<i32>} : memref<32x64xf32, #tpu.memory_space<vmem>>, vector<32x64xf32>,
    } else {
    }
    %c0_i32_18 = arith.constant 0 : i32
    %47 = arith.cmpi eq, %arg1, %c0_i32_18 : i32
    %48 = arith.extui %47 : i1 to i32
    %c0_i32_19 = arith.constant 0 : i32
    %49 = arith.cmpi ne, %48, %c0_i32_19 : i32
    scf.if %49 {
      %53 = arith.mulf %37, %37 : vector<16x64xf32>
      %cst_21 = arith.constant dense<0.000000e+00> : vector<16xf32>
      %54 = vector.multi_reduction <add>, %53, %cst_21 [1] : vector<16x64xf32> to vector<16xf32>
      %55 = vector.shape_cast %54 : vector<16xf32> to vector<16x1xf32>
      %cst_22 = arith.constant 5.000000e-01 : f32
      %56 = vector.broadcast %cst_22 : f32 to vector<16x1xf32>
      %57 = arith.mulf %56, %55 : vector<16x1xf32>
      %58 = vector.broadcast %57 : vector<16x1xf32> to vector<16x32xf32>
      %59 = arith.subf %40, %58 : vector<16x32xf32>
      %60 = math.exp %59 : vector<16x32xf32>
      %cst_23 = arith.constant 0.176776692 : f32
      %61 = vector.broadcast %cst_23 : f32 to vector<16x32xf32>
      %62 = arith.mulf %60, %61 : vector<16x32xf32>
      %63 = tpu.iota {dimensions = array<i32: 0>} : vector<16x32xi32>
      %c16_i32 = arith.constant 16 : i32
      %64 = arith.muli %arg2, %c16_i32 : i32
      %c16_i32_24 = arith.constant 16 : i32
      %65 = arith.subi %c16_i32_24, %64 : i32
      %66 = vector.broadcast %65 : i32 to vector<16x32xi32>
      %67 = arith.cmpi slt, %63, %66 : vector<16x32xi32>
      %cst_25 = arith.constant 0.000000e+00 : f32
      %68 = vector.broadcast %cst_25 : f32 to vector<16x32xf32>
      %69 = arith.select %67, %62, %68 : vector<16x32xi1>, vector<16x32xf32>
      %c0_26 = arith.constant 0 : index
      %c0_27 = arith.constant 0 : index
      %70 = vector.load %arg10[%c0_26, %c0_27] : memref<1x32xf32, #tpu.memory_space<vmem>>, vector<1x32xf32>
      %cst_28 = arith.constant dense<0.000000e+00> : vector<32xf32>
      %71 = vector.multi_reduction <add>, %69, %cst_28 [0] : vector<16x32xf32> to vector<32xf32>
      %72 = vector.shape_cast %71 : vector<32xf32> to vector<1x32xf32>
      %73 = arith.addf %70, %72 : vector<1x32xf32>
      %c0_29 = arith.constant 0 : index
      %c0_30 = arith.constant 0 : index
      %74 = vector.load %arg10[%c0_29, %c0_30] : memref<1x32xf32, #tpu.memory_space<vmem>>, vector<1x32xf32>
      tpu.vector_store %arg10[%c0_29, %c0_30], %73 {strides = array<i32>} : memref<1x32xf32, #tpu.memory_space<vmem>>, vector<1x32xf32>,
      %c0_31 = arith.constant 0 : index
      %c0_32 = arith.constant 0 : index
      %75 = vector.load %arg11[%c0_31, %c0_32] : memref<32x64xf32, #tpu.memory_space<vmem>>, vector<32x64xf32>
      %cst_33 = arith.constant dense<0.000000e+00> : vector<32x64xf32>
      %76 = tpu.matmul %69, %39, %cst_33 {dimension_numbers = #tpu.dot_dimension_numbers<[0], [0], [1], [1], [0, 1, 1, 1], [], []>} : vector<16x32xf32>, vector<16x64xf32>, vector<32x64xf32> -> vector<32x64xf32>
      %77 = arith.addf %75, %76 : vector<32x64xf32>
      %c0_34 = arith.constant 0 : index
      %c0_35 = arith.constant 0 : index
      %78 = vector.load %arg11[%c0_34, %c0_35] : memref<32x64xf32, #tpu.memory_space<vmem>>, vector<32x64xf32>
      tpu.vector_store %arg11[%c0_34, %c0_35], %77 {strides = array<i32>} : memref<32x64xf32, #tpu.memory_space<vmem>>, vector<32x64xf32>,
    } else {
    }
    %c1_i32 = arith.constant 1 : i32
    %50 = arith.cmpi eq, %arg1, %c1_i32 : i32
    %51 = arith.extui %50 : i1 to i32
    %c0_i32_20 = arith.constant 0 : i32
    %52 = arith.cmpi ne, %51, %c0_i32_20 : i32
    scf.if %52 {
      %53 = arith.mulf %38, %38 : vector<16x64xf32>
      %cst_21 = arith.constant dense<0.000000e+00> : vector<16xf32>
      %54 = vector.multi_reduction <add>, %53, %cst_21 [1] : vector<16x64xf32> to vector<16xf32>
      %55 = vector.shape_cast %54 : vector<16xf32> to vector<16x1xf32>
      %cst_22 = arith.constant 5.000000e-01 : f32
      %56 = vector.broadcast %cst_22 : f32 to vector<16x1xf32>
      %57 = arith.mulf %56, %55 : vector<16x1xf32>
      %58 = vector.broadcast %57 : vector<16x1xf32> to vector<16x32xf32>
      %59 = arith.subf %41, %58 : vector<16x32xf32>
      %60 = math.exp %59 : vector<16x32xf32>
      %cst_23 = arith.constant 0.176776692 : f32
      %61 = vector.broadcast %cst_23 : f32 to vector<16x32xf32>
      %62 = arith.mulf %60, %61 : vector<16x32xf32>
      %c0_24 = arith.constant 0 : index
      %c0_25 = arith.constant 0 : index
      %63 = vector.load %arg10[%c0_24, %c0_25] : memref<1x32xf32, #tpu.memory_space<vmem>>, vector<1x32xf32>
      %64 = vector.broadcast %63 : vector<1x32xf32> to vector<16x32xf32>
      %65 = arith.mulf %62, %64 : vector<16x32xf32>
      %cst_26 = arith.constant dense<0.000000e+00> : vector<16xf32>
      %66 = vector.multi_reduction <add>, %65, %cst_26 [1] : vector<16x32xf32> to vector<16xf32>
      %67 = vector.shape_cast %66 : vector<16xf32> to vector<16x1xf32>
      %c0_27 = arith.constant 0 : index
      %c0_28 = arith.constant 0 : index
      %68 = vector.load %arg11[%c0_27, %c0_28] : memref<32x64xf32, #tpu.memory_space<vmem>>, vector<32x64xf32>
      %cst_29 = arith.constant dense<0.000000e+00> : vector<16x64xf32>
      %69 = tpu.matmul %62, %68, %cst_29 {dimension_numbers = #tpu.dot_dimension_numbers<[1], [0], [0], [1], [0, 0, 1, 1], [], []>} : vector<16x32xf32>, vector<32x64xf32>, vector<16x64xf32> -> vector<16x64xf32>
      %cst_30 = arith.constant 9.99999993E-9 : f32
      %70 = vector.broadcast %cst_30 : f32 to vector<16x1xf32>
      %71 = arith.addf %67, %70 : vector<16x1xf32>
      %72 = vector.broadcast %71 : vector<16x1xf32> to vector<16x64xf32>
      %73 = arith.divf %69, %72 : vector<16x64xf32>
      %c0_31 = arith.constant 0 : index
      %c0_32 = arith.constant 0 : index
      %74 = vector.load %arg7[%c0_31, %c0_32] : memref<192x64xbf16, #tpu.memory_space<vmem>>, vector<64x64xbf16>
      %c64 = arith.constant 64 : index
      %c0_33 = arith.constant 0 : index
      %75 = vector.load %arg7[%c64, %c0_33] : memref<192x64xbf16, #tpu.memory_space<vmem>>, vector<64x64xbf16>
      %c128 = arith.constant 128 : index
      %c0_34 = arith.constant 0 : index
      %76 = vector.load %arg7[%c128, %c0_34] : memref<192x64xbf16, #tpu.memory_space<vmem>>, vector<64x64xbf16>
      %c0_35 = arith.constant 0 : index
      %c0_36 = arith.constant 0 : index
      %77 = vector.load %arg8[%c0_35, %c0_36] : memref<8x64xf32, #tpu.memory_space<vmem>>, vector<8x64xf32>
      %78 = vector.extract_strided_slice %77 {offsets = [0, 0], sizes = [1, 64], strides = [1, 1]} : vector<8x64xf32> to vector<1x64xf32>
      %79 = vector.extract_strided_slice %77 {offsets = [1, 0], sizes = [1, 64], strides = [1, 1]} : vector<8x64xf32> to vector<1x64xf32>
      %80 = vector.extract_strided_slice %77 {offsets = [2, 0], sizes = [1, 64], strides = [1, 1]} : vector<8x64xf32> to vector<1x64xf32>
      %81 = vector.extract_strided_slice %77 {offsets = [3, 0], sizes = [1, 64], strides = [1, 1]} : vector<8x64xf32> to vector<1x64xf32>
      %82 = vector.extract_strided_slice %77 {offsets = [4, 0], sizes = [1, 64], strides = [1, 1]} : vector<8x64xf32> to vector<1x64xf32>
      %83 = arith.truncf %73 : vector<16x64xf32> to vector<16x64xbf16>
      %cst_37 = arith.constant dense<0.000000e+00> : vector<16x64xf32>
      %84 = tpu.matmul %83, %74, %cst_37 {dimension_numbers = #tpu.dot_dimension_numbers<[1], [0], [0], [1], [0, 0, 1, 1], [], []>} : vector<16x64xbf16>, vector<64x64xbf16>, vector<16x64xf32> -> vector<16x64xf32>
      %85 = vector.broadcast %78 : vector<1x64xf32> to vector<16x64xf32>
      %86 = arith.addf %84, %85 : vector<16x64xf32>
      %87 = arith.addf %39, %86 : vector<16x64xf32>
      %cst_38 = arith.constant dense<0.000000e+00> : vector<16xf32>
      %88 = vector.multi_reduction <add>, %87, %cst_38 [1] : vector<16x64xf32> to vector<16xf32>
      %89 = vector.shape_cast %88 : vector<16xf32> to vector<16x1xf32>
      %cst_39 = arith.constant 1.562500e-02 : f32
      %90 = vector.broadcast %cst_39 : f32 to vector<16x1xf32>
      %91 = arith.mulf %89, %90 : vector<16x1xf32>
      %92 = vector.broadcast %91 : vector<16x1xf32> to vector<16x64xf32>
      %93 = arith.subf %87, %92 : vector<16x64xf32>
      %94 = arith.mulf %93, %93 : vector<16x64xf32>
      %cst_40 = arith.constant dense<0.000000e+00> : vector<16xf32>
      %95 = vector.multi_reduction <add>, %94, %cst_40 [1] : vector<16x64xf32> to vector<16xf32>
      %96 = vector.shape_cast %95 : vector<16xf32> to vector<16x1xf32>
      %cst_41 = arith.constant 1.562500e-02 : f32
      %97 = vector.broadcast %cst_41 : f32 to vector<16x1xf32>
      %98 = arith.mulf %96, %97 : vector<16x1xf32>
      %cst_42 = arith.constant 0.000000e+00 : f32
      %99 = vector.broadcast %cst_42 : f32 to vector<16x1xf32>
      %100 = arith.maximumf %98, %99 : vector<16x1xf32>
      %cst_43 = arith.constant 9.99999974E-6 : f32
      %101 = vector.broadcast %cst_43 : f32 to vector<16x1xf32>
      %102 = arith.addf %100, %101 : vector<16x1xf32>
      %103 = math.rsqrt %102 : vector<16x1xf32>
      %104 = vector.broadcast %103 : vector<16x1xf32> to vector<16x64xf32>
      %105 = arith.mulf %93, %104 : vector<16x64xf32>
      %106 = vector.broadcast %79 : vector<1x64xf32> to vector<16x64xf32>
      %107 = arith.mulf %105, %106 : vector<16x64xf32>
      %108 = vector.broadcast %80 : vector<1x64xf32> to vector<16x64xf32>
      %109 = arith.addf %107, %108 : vector<16x64xf32>
      %110 = arith.truncf %109 : vector<16x64xf32> to vector<16x64xbf16>
      %cst_44 = arith.constant dense<0.000000e+00> : vector<16x64xf32>
      %111 = tpu.matmul %110, %75, %cst_44 {dimension_numbers = #tpu.dot_dimension_numbers<[1], [0], [0], [1], [0, 0, 1, 1], [], []>} : vector<16x64xbf16>, vector<64x64xbf16>, vector<16x64xf32> -> vector<16x64xf32>
      %112 = vector.broadcast %81 : vector<1x64xf32> to vector<16x64xf32>
      %113 = arith.addf %111, %112 : vector<16x64xf32>
      %cst_45 = arith.constant 5.000000e-01 : f32
      %114 = vector.broadcast %cst_45 : f32 to vector<16x64xf32>
      %115 = arith.mulf %114, %113 : vector<16x64xf32>
      %cst_46 = arith.constant 0.707106769 : f32
      %116 = vector.broadcast %cst_46 : f32 to vector<16x64xf32>
      %117 = arith.mulf %113, %116 : vector<16x64xf32>
      %118 = math.absf %117 : vector<16x64xf32>
      %cst_47 = arith.constant 0.327591091 : f32
      %119 = vector.broadcast %cst_47 : f32 to vector<16x64xf32>
      %120 = arith.mulf %119, %118 : vector<16x64xf32>
      %cst_48 = arith.constant 1.000000e+00 : f32
      %121 = vector.broadcast %cst_48 : f32 to vector<16x64xf32>
      %122 = arith.addf %121, %120 : vector<16x64xf32>
      %cst_49 = arith.constant 1.000000e+00 : f32
      %123 = vector.broadcast %cst_49 : f32 to vector<16x64xf32>
      %124 = arith.divf %123, %122 : vector<16x64xf32>
      %cst_50 = arith.constant 1.06140542 : f32
      %125 = vector.broadcast %cst_50 : f32 to vector<16x64xf32>
      %126 = arith.mulf %125, %124 : vector<16x64xf32>
      %cst_51 = arith.constant -1.45315206 : f32
      %127 = vector.broadcast %cst_51 : f32 to vector<16x64xf32>
      %128 = arith.addf %126, %127 : vector<16x64xf32>
      %129 = arith.mulf %128, %124 : vector<16x64xf32>
      %cst_52 = arith.constant 1.42141378 : f32
      %130 = vector.broadcast %cst_52 : f32 to vector<16x64xf32>
      %131 = arith.addf %129, %130 : vector<16x64xf32>
      %132 = arith.mulf %131, %124 : vector<16x64xf32>
      %cst_53 = arith.constant -0.284496725 : f32
      %133 = vector.broadcast %cst_53 : f32 to vector<16x64xf32>
      %134 = arith.addf %132, %133 : vector<16x64xf32>
      %135 = arith.mulf %134, %124 : vector<16x64xf32>
      %cst_54 = arith.constant 0.254829586 : f32
      %136 = vector.broadcast %cst_54 : f32 to vector<16x64xf32>
      %137 = arith.addf %135, %136 : vector<16x64xf32>
      %138 = arith.mulf %137, %124 : vector<16x64xf32>
      %cst_55 = arith.constant 0.000000e+00 : f32
      %139 = vector.broadcast %cst_55 : f32 to vector<16x64xf32>
      %140 = arith.subf %139, %118 : vector<16x64xf32>
      %141 = arith.mulf %140, %118 : vector<16x64xf32>
      %142 = math.exp %141 : vector<16x64xf32>
      %143 = arith.mulf %138, %142 : vector<16x64xf32>
      %cst_56 = arith.constant 1.000000e+00 : f32
      %144 = vector.broadcast %cst_56 : f32 to vector<16x64xf32>
      %145 = arith.subf %144, %143 : vector<16x64xf32>
      %cst_57 = arith.constant 0.000000e+00 : f32
      %146 = vector.broadcast %cst_57 : f32 to vector<16x64xf32>
      %147 = arith.cmpf oge, %117, %146 : vector<16x64xf32>
      %cst_58 = arith.constant 0.000000e+00 : f32
      %148 = vector.broadcast %cst_58 : f32 to vector<16x64xf32>
      %149 = arith.subf %148, %145 : vector<16x64xf32>
      %150 = arith.select %147, %145, %149 : vector<16x64xi1>, vector<16x64xf32>
      %cst_59 = arith.constant 1.000000e+00 : f32
      %151 = vector.broadcast %cst_59 : f32 to vector<16x64xf32>
      %152 = arith.addf %151, %150 : vector<16x64xf32>
      %153 = arith.mulf %115, %152 : vector<16x64xf32>
      %154 = arith.truncf %153 : vector<16x64xf32> to vector<16x64xbf16>
      %cst_60 = arith.constant dense<0.000000e+00> : vector<16x64xf32>
      %155 = tpu.matmul %154, %76, %cst_60 {dimension_numbers = #tpu.dot_dimension_numbers<[1], [0], [0], [1], [0, 0, 1, 1], [], []>} : vector<16x64xbf16>, vector<64x64xbf16>, vector<16x64xf32> -> vector<16x64xf32>
      %156 = vector.broadcast %82 : vector<1x64xf32> to vector<16x64xf32>
      %157 = arith.addf %155, %156 : vector<16x64xf32>
      %158 = arith.addf %87, %157 : vector<16x64xf32>
      %159 = arith.truncf %158 : vector<16x64xf32> to vector<16x64xbf16>
      %c0_61 = arith.constant 0 : index
      %c0_62 = arith.constant 0 : index
      %c0_63 = arith.constant 0 : index
      %160 = vector.load %arg9[%c0_61, %c0_62, %c0_63] : memref<1x16x64xbf16, #tpu.memory_space<vmem>>, vector<1x16x64xbf16>
      %161 = vector.shape_cast %160 : vector<1x16x64xbf16> to vector<16x64xbf16>
      %162 = vector.shape_cast %159 : vector<16x64xbf16> to vector<1x16x64xbf16>
      tpu.vector_store %arg9[%c0_61, %c0_62, %c0_63], %162 {strides = array<i32>} : memref<1x16x64xbf16, #tpu.memory_space<vmem>>, vector<1x16x64xbf16>,
    } else {
    }
    return
  }
  func.func @transform_0(%arg0: i32, %arg1: i32, %arg2: i32) -> (i32, i32, i32) {
    %c0_i32 = arith.constant 0 : i32
    %c0_i32_0 = arith.constant 0 : i32
    return %arg0, %arg2, %c0_i32 : i32, i32, i32
  }
  func.func @transform_1(%arg0: i32, %arg1: i32, %arg2: i32) -> (i32, i32) {
    %c0_i32 = arith.constant 0 : i32
    %c0_i32_0 = arith.constant 0 : i32
    %c0_i32_1 = arith.constant 0 : i32
    return %c0_i32, %c0_i32_0 : i32, i32
  }
  func.func @transform_2(%arg0: i32, %arg1: i32, %arg2: i32) -> (i32, i32) {
    %c0_i32 = arith.constant 0 : i32
    %c0_i32_0 = arith.constant 0 : i32
    %c0_i32_1 = arith.constant 0 : i32
    return %c0_i32, %c0_i32_0 : i32, i32
  }
  func.func @transform_3(%arg0: i32, %arg1: i32, %arg2: i32) -> (i32, i32) {
    %c0_i32 = arith.constant 0 : i32
    %c0_i32_0 = arith.constant 0 : i32
    %c0_i32_1 = arith.constant 0 : i32
    return %c0_i32, %c0_i32_0 : i32, i32
  }
  func.func @transform_4(%arg0: i32, %arg1: i32, %arg2: i32) -> (i32, i32) {
    %c0_i32 = arith.constant 0 : i32
    %c0_i32_0 = arith.constant 0 : i32
    %c0_i32_1 = arith.constant 0 : i32
    return %c0_i32, %c0_i32_0 : i32, i32
  }
  func.func @transform_5(%arg0: i32, %arg1: i32, %arg2: i32) -> (i32, i32) {
    %c0_i32 = arith.constant 0 : i32
    %c0_i32_0 = arith.constant 0 : i32
    %c0_i32_1 = arith.constant 0 : i32
    return %c0_i32, %c0_i32_0 : i32, i32
  }
  func.func @transform_6(%arg0: i32, %arg1: i32, %arg2: i32) -> (i32, i32, i32) {
    %0 = arith.muli %arg2, %arg1 : i32
    %c0_i32 = arith.constant 0 : i32
    %c0_i32_0 = arith.constant 0 : i32
    return %arg0, %0, %c0_i32 : i32, i32, i32
  }
}

</mosaic_0001>

<llo_original>
// kernel: tpu_custom_call.1
$region0: #{tpu_custom_call.1}
  #allocation0 [shape = 'u32[]', space=smem, size = 0x4, offset = 0x4, fixed_abs, tag = 'smem constant byte address 0x4 - core index']
  #allocation1 [shape = 'u32[144,128]{1,0:T(1,128)}', space=vmem, size = 0x12000, scoped, tag = 'internal scratch']
  #allocation2 [shape = 'f32[1,32]{1,0:T(1,128)}', space=vmem, size = 0x200, scoped, tag = 'scratch operand']
  #allocation3 [shape = 'f32[32,64]{1,0:T(8,128)}', space=vmem, size = 0x4000, scoped, tag = 'scratch operand']
  %s0 = inlined_call_operand.vmem [shape: bf16[2,16,256], index: 0, kind: input, shape index: {}]
  %s1 = inlined_call_operand.vmem [shape: f32[2,256], index: 1, kind: input, shape index: {}]
  %s2 = inlined_call_operand.hbm [shape: bf16[256,256], index: 2, kind: input, shape index: {}]
  %s3 = inlined_call_operand.vmem [shape: f32[1,256], index: 3, kind: input, shape index: {}]
  %s4 = inlined_call_operand.vmem [shape: bf16[192,64], index: 4, kind: input, shape index: {}]
  %s5 = inlined_call_operand.vmem [shape: f32[8,64], index: 5, kind: input, shape index: {}]
  %s6 = inlined_call_operand.hbm [shape: bf16[2,16,64], index: 6, kind: output, shape index: {}]
  %s7 = sld [smem:[#allocation0]]
  $region73: #{tpu_custom_call.1} parent=0
    _
  %s9 = ssub.s32 1, %s7
  %s10 = scalar_select 0, %s9, %s7
  $region1: #{tpu_custom_call.1} parent=0
    #allocation4 [shape = 'u8[131072]{0}', space=vmem, size = 0x20000, scoped, tag = 'input window, operand 2, single buffered']
    #allocation5 [shape = 's32[2]{0}', space=sflag, size = 0x8, scoped, tag = 'scoped memory for tpu_custom_call.1']
    #allocation6 [shape = 's32[2]{0}', space=sflag, size = 0x8, scoped, tag = 'scoped memory for tpu_custom_call.1']
    #allocation7 [shape = 'u8[8192]{0}', space=vmem, size = 0x2000, scoped, tag = 'output window, operand 0']
    %11 = vsyncpa [#allocation5], 0
    %12 = vsyncpa [#allocation6], 0
    %s13 = scalar_lea.sflag [#allocation6], 1
    %14 = vsyncpa %s13, 0
    loop: start=0, step=1, limit=6
    $region2: #{tpu_custom_call.1} parent=1 // loop_pre_header
      _
    $region3: #{tpu_custom_call.1} parent=1 // loop_header
      %s16 = sphi 0, %s20
      %p17 = scmp.ge.s32.totalorder %s16, 6
      %s23 = sphi 0, %s42
      %s24 = sphi 0, %s38
      %s25 = sphi 0, %s34
      %s26 = sphi 0, %s23
      %s27 = sphi 0, %s24
      %s28 = sphi 0, %s25
      %s29 = sphi 0, %s26
      %s30 = sphi 0, %s27
      %s31 = sphi 0, %s28
      %s47 = sphi 0, %s49
      %s50 = sphi 0, %s47
      %s51 = sphi 0, %s50
      %s67 = sphi 0, %s51
      %s71 = sphi 0, %s71
      %s73 = sphi 0, %s71
      %s74 = sphi 0, %s73
      %s88 = sphi 0, %s74
      %s92 = sphi 0, %s92
      %s94 = sphi 0, %s92
      %s95 = sphi 0, %s94
      %s109 = sphi 0, %s95
      %s113 = sphi 0, %s113
      %s115 = sphi 0, %s113
      %s116 = sphi 0, %s115
      %s130 = sphi 0, %s116
      %s134 = sphi 0, %s134
      %s136 = sphi 0, %s134
      %s137 = sphi 0, %s136
      %s151 = sphi 0, %s137
      %s155 = sphi 0, %s155
      %s157 = sphi 0, %s155
      %s158 = sphi 0, %s157
      %s172 = sphi 0, %s158
      %s182 = sphi 0, %s184
      %s185 = sphi 0, %s182
      %s186 = sphi 0, %s185
      %s202 = sphi 0, %s186
    $region4: #{tpu_custom_call.1} parent=1 // loop_header_branch
      %19 = sbr.rel (%p17) target = $region8
    $region5: #{tpu_custom_call.1} parent=1 // loop_body
      %s21 = ssub.s32 %s16, 1
      %s22 = ssub.s32 %s16, 2
      %s32 = sadd.s32 1, %s25
      %p33 = scmp.ge.s32.totalorder %s32, 1
      %s34 = scalar_select %p33, 0, %s32
      %s35 = sadd.s32 1, %s24
      %s36 = scalar_select %p33, %s35, %s24
      %p37 = scmp.ge.s32.totalorder %s36, 2
      %s38 = scalar_select %p37, 0, %s36
      %s39 = sadd.s32 1, %s23
      %s40 = scalar_select %p37, %s39, %s23
      %p41 = scmp.ge.s32.totalorder %s40, 2
      %s42 = scalar_select %p41, 0, %s40
      %s43 = ssub.s32 %s23, %s42
      %s44 = ssub.s32 %s25, %s34
      %s45 = sor.u32 %s43, %s44
      %p46 = scmp.eq.s32.totalorder %s45, 0
      %s48 = sadd.s32 %s47, 1
      %s49 = scalar_select %p46, %s47, %s48
      %p52 = pneg %p46
      %p53 = scmp.eq.s32.totalorder %s16, 3
      %p54 = por %p52, %p53
      %p55 = scmp.ne.s32.totalorder %s47, %s50
      %p56 = scmp.eq.s32.totalorder %s16, 0
      %p57 = por %p55, %p56
      %p58 = scmp.ne.s32.totalorder %s47, %s50
      %p59 = scmp.eq.s32.totalorder %s21, 3
      %p60 = por %p58, %p59
      %p61 = scmp.ne.s32.totalorder %s50, %s51
      %p62 = scmp.eq.s32.totalorder %s21, 0
      %p63 = por %p61, %p62
      %p64 = scmp.ne.s32.totalorder %s50, %s51
      %p65 = scmp.eq.s32.totalorder %s22, 3
      %p66 = por %p64, %p65
      %p68 = scmp.ne.s32.totalorder %s51, %s67
      %p69 = scmp.eq.s32.totalorder %s22, 0
      %p70 = por %p68, %p69
      %s72 = sadd.s32 %s71, 1
      %p75 = scmp.eq.s32.totalorder %s16, 3
      %p76 = scmp.ne.s32.totalorder %s71, %s73
      %p77 = scmp.eq.s32.totalorder %s16, 0
      %p78 = por %p76, %p77
      %p79 = scmp.ne.s32.totalorder %s71, %s73
      %p80 = scmp.eq.s32.totalorder %s21, 3
      %p81 = por %p79, %p80
      %p82 = scmp.ne.s32.totalorder %s73, %s74
      %p83 = scmp.eq.s32.totalorder %s21, 0
      %p84 = por %p82, %p83
      %p85 = scmp.ne.s32.totalorder %s73, %s74
      %p86 = scmp.eq.s32.totalorder %s22, 3
      %p87 = por %p85, %p86
      %p89 = scmp.ne.s32.totalorder %s74, %s88
      %p90 = scmp.eq.s32.totalorder %s22, 0
      %p91 = por %p89, %p90
      %s93 = sadd.s32 %s92, 1
      %p96 = scmp.eq.s32.totalorder %s16, 3
      %p97 = scmp.ne.s32.totalorder %s92, %s94
      %p98 = scmp.eq.s32.totalorder %s16, 0
      %p99 = por %p97, %p98
      %p100 = scmp.ne.s32.totalorder %s92, %s94
      %p101 = scmp.eq.s32.totalorder %s21, 3
      %p102 = por %p100, %p101
      %p103 = scmp.ne.s32.totalorder %s94, %s95
      %p104 = scmp.eq.s32.totalorder %s21, 0
      %p105 = por %p103, %p104
      %p106 = scmp.ne.s32.totalorder %s94, %s95
      %p107 = scmp.eq.s32.totalorder %s22, 3
      %p108 = por %p106, %p107
      %p110 = scmp.ne.s32.totalorder %s95, %s109
      %p111 = scmp.eq.s32.totalorder %s22, 0
      %p112 = por %p110, %p111
      %s114 = sadd.s32 %s113, 1
      %p117 = scmp.eq.s32.totalorder %s16, 3
      %p118 = scmp.ne.s32.totalorder %s113, %s115
      %p119 = scmp.eq.s32.totalorder %s16, 0
      %p120 = por %p118, %p119
      %p121 = scmp.ne.s32.totalorder %s113, %s115
      %p122 = scmp.eq.s32.totalorder %s21, 3
      %p123 = por %p121, %p122
      %p124 = scmp.ne.s32.totalorder %s115, %s116
      %p125 = scmp.eq.s32.totalorder %s21, 0
      %p126 = por %p124, %p125
      %p127 = scmp.ne.s32.totalorder %s115, %s116
      %p128 = scmp.eq.s32.totalorder %s22, 3
      %p129 = por %p127, %p128
      %p131 = scmp.ne.s32.totalorder %s116, %s130
      %p132 = scmp.eq.s32.totalorder %s22, 0
      %p133 = por %p131, %p132
      %s135 = sadd.s32 %s134, 1
      %p138 = scmp.eq.s32.totalorder %s16, 3
      %p139 = scmp.ne.s32.totalorder %s134, %s136
      %p140 = scmp.eq.s32.totalorder %s16, 0
      %p141 = por %p139, %p140
      %p142 = scmp.ne.s32.totalorder %s134, %s136
      %p143 = scmp.eq.s32.totalorder %s21, 3
      %p144 = por %p142, %p143
      %p145 = scmp.ne.s32.totalorder %s136, %s137
      %p146 = scmp.eq.s32.totalorder %s21, 0
      %p147 = por %p145, %p146
      %p148 = scmp.ne.s32.totalorder %s136, %s137
      %p149 = scmp.eq.s32.totalorder %s22, 3
      %p150 = por %p148, %p149
      %p152 = scmp.ne.s32.totalorder %s137, %s151
      %p153 = scmp.eq.s32.totalorder %s22, 0
      %p154 = por %p152, %p153
      %s156 = sadd.s32 %s155, 1
      %p159 = scmp.eq.s32.totalorder %s16, 3
      %p160 = scmp.ne.s32.totalorder %s155, %s157
      %p161 = scmp.eq.s32.totalorder %s16, 0
      %p162 = por %p160, %p161
      %p163 = scmp.ne.s32.totalorder %s155, %s157
      %p164 = scmp.eq.s32.totalorder %s21, 3
      %p165 = por %p163, %p164
      %p166 = scmp.ne.s32.totalorder %s157, %s158
      %p167 = scmp.eq.s32.totalorder %s21, 0
      %p168 = por %p166, %p167
      %p169 = scmp.ne.s32.totalorder %s157, %s158
      %p170 = scmp.eq.s32.totalorder %s22, 3
      %p171 = por %p169, %p170
      %p173 = scmp.ne.s32.totalorder %s158, %s172
      %p174 = scmp.eq.s32.totalorder %s22, 0
      %p175 = por %p173, %p174
      %s176 = smul.u32 %s25, %s24
      %s177 = smul.u32 %s34, %s38
      %s178 = ssub.s32 %s23, %s42
      %s179 = ssub.s32 %s176, %s177
      %s180 = sor.u32 %s178, %s179
      %p181 = scmp.eq.s32.totalorder %s180, 0
      %s183 = sadd.s32 %s182, 1
      %s184 = scalar_select %p181, %s182, %s183
      %p187 = pneg %p181
      %p188 = scmp.eq.s32.totalorder %s16, 3
      %p189 = por %p187, %p188
      %p190 = scmp.ne.s32.totalorder %s182, %s185
      %p191 = scmp.eq.s32.totalorder %s16, 0
      %p192 = por %p190, %p191
      %p193 = scmp.ne.s32.totalorder %s182, %s185
      %p194 = scmp.eq.s32.totalorder %s21, 3
      %p195 = por %p193, %p194
      %p196 = scmp.ne.s32.totalorder %s185, %s186
      %p197 = scmp.eq.s32.totalorder %s21, 0
      %p198 = por %p196, %p197
      %p199 = scmp.ne.s32.totalorder %s185, %s186
      %p200 = scmp.eq.s32.totalorder %s22, 3
      %p201 = por %p199, %p200
      %p203 = scmp.ne.s32.totalorder %s186, %s202
      %p204 = scmp.eq.s32.totalorder %s22, 0
      %p205 = por %p203, %p204
      %p206 = scmp.le.s32.totalorder 1, %s16
      %p207 = scmp.lt.s32.totalorder %s16, 5
      %p208 = pnand %p206, %p207
      %p209 = pneg %p208
      // Predicated region
      $region9: #{tpu_custom_call.1} parent=5 // pred_check
        _
      $region10: #{tpu_custom_call.1} parent=5 // pred_check_branch
        %211 = sbr.rel (%p208) target = $region12
      $region11: #{tpu_custom_call.1} parent=5 // pred_region
        %s212 = ssub.s32 %s16, 1
        // Predicated region
        $region13: #{tpu_custom_call.1} parent=11 // pred_check
          %p213 = pneg %p84
        $region14: #{tpu_custom_call.1} parent=11 // pred_check_branch
          %215 = sbr.rel (%p213) target = $region16
        $region15: #{tpu_custom_call.1} parent=11 // pred_region
          _
        $region16: #{tpu_custom_call.1} parent=11 // pred_fallthru
          _
        // Predicated region
        $region17: #{tpu_custom_call.1} parent=11 // pred_check
          %p216 = pneg %p105
        $region18: #{tpu_custom_call.1} parent=11 // pred_check_branch
          %218 = sbr.rel (%p216) target = $region20
        $region19: #{tpu_custom_call.1} parent=11 // pred_region
          %s220 = ssub.s32 4096, 4096
          %221 = vsyncadd [#allocation5], %s220
          %s222 = sshll.u32 [#allocation4], 4
          %s223 = int_to_ptr.vmem [resolvable:$true] %s222
          %228 = dma.hbm_to_vmem [thread:$0]  %s2, 4096, %s223, [#allocation5], 128, 128, 8
        $region20: #{tpu_custom_call.1} parent=11 // pred_fallthru
          _
        // Predicated region
        $region21: #{tpu_custom_call.1} parent=11 // pred_check
          %p229 = pneg %p126
        $region22: #{tpu_custom_call.1} parent=11 // pred_check_branch
          %231 = sbr.rel (%p229) target = $region24
        $region23: #{tpu_custom_call.1} parent=11 // pred_region
          _
        $region24: #{tpu_custom_call.1} parent=11 // pred_fallthru
          _
        // Predicated region
        $region25: #{tpu_custom_call.1} parent=11 // pred_check
          %p232 = pneg %p147
        $region26: #{tpu_custom_call.1} parent=11 // pred_check_branch
          %234 = sbr.rel (%p232) target = $region28
        $region27: #{tpu_custom_call.1} parent=11 // pred_region
          _
        $region28: #{tpu_custom_call.1} parent=11 // pred_fallthru
          _
        // Predicated region
        $region29: #{tpu_custom_call.1} parent=11 // pred_check
          %p235 = pneg %p168
        $region30: #{tpu_custom_call.1} parent=11 // pred_check_branch
          %237 = sbr.rel (%p235) target = $region32
        $region31: #{tpu_custom_call.1} parent=11 // pred_region
          _
        $region32: #{tpu_custom_call.1} parent=11 // pred_fallthru
          _
      $region12: #{tpu_custom_call.1} parent=5 // pred_fallthru
        _
      %p238 = scmp.lt.s32.totalorder %s16, 4
      // Predicated region
      $region33: #{tpu_custom_call.1} parent=5 // pred_check
        %p239 = pneg %p238
      $region34: #{tpu_custom_call.1} parent=5 // pred_check_branch
        %241 = sbr.rel (%p239) target = $region36
      $region35: #{tpu_custom_call.1} parent=5 // pred_region
        // Predicated region
        $region37: #{tpu_custom_call.1} parent=35 // pred_check
          %p242 = pneg %p57
        $region38: #{tpu_custom_call.1} parent=35 // pred_check_branch
          %244 = sbr.rel (%p242) target = $region40
        $region39: #{tpu_custom_call.1} parent=35 // pred_region
          %s245 = smul.u32 2, %s25
          %p246 = scmp.lt.s32.totalorder %s23, 1
          %s247 = scalar_select %p246, %s23, 1
          %p248 = scmp.lt.s32.totalorder %s245, 1
          %s249 = scalar_select %p248, %s245, 1
          %s250 = smul.addr %s249, 2
          %s251 = smul.addr %s247, 4
          %s252 = sadd.s32 %s250, %s251
          %s253 = smul.addr %s252, 4
          %s254 = scalar_lea.vmem %s0, %s253
          %s255 = smul.u32 2, %s25
        $region40: #{tpu_custom_call.1} parent=35 // pred_fallthru
          _
      $region36: #{tpu_custom_call.1} parent=5 // pred_fallthru
        _
      %p256 = scmp.le.s32.totalorder 1, %s16
      %p257 = scmp.lt.s32.totalorder %s16, 5
      %p258 = pnand %p256, %p257
      %p259 = pneg %p258
      // Predicated region
      $region41: #{tpu_custom_call.1} parent=5 // pred_check
        _
      $region42: #{tpu_custom_call.1} parent=5 // pred_check_branch
        %261 = sbr.rel (%p258) target = $region44
      $region43: #{tpu_custom_call.1} parent=5 // pred_region
        %s262 = ssub.s32 %s16, 1
        // Predicated region
        $region45: #{tpu_custom_call.1} parent=43 // pred_check
          %p263 = pneg %p105
        $region46: #{tpu_custom_call.1} parent=43 // pred_check_branch
          %265 = sbr.rel (%p263) target = $region48
        $region47: #{tpu_custom_call.1} parent=43 // pred_region
          %266 = dma.done [#allocation5], 4096
        $region48: #{tpu_custom_call.1} parent=43 // pred_fallthru
          _
        %s267 = smul.u32 2, %s28
        %p268 = scmp.lt.s32.totalorder %s26, 1
        %s269 = scalar_select %p268, %s26, 1
        %p270 = scmp.lt.s32.totalorder %s267, 1
        %s271 = scalar_select %p270, %s267, 1
        %s272 = smul.addr %s271, 2
        %s273 = smul.addr %s269, 4
        %s274 = sadd.s32 %s272, %s273
        %s275 = smul.addr %s274, 4
        %s276 = scalar_lea.vmem %s0, %s275
        %p277 = pneg %p63
        %p278 = pneg %p60
        %p279 = pneg %p84
        %p280 = pneg %p81
        %p281 = pneg %p105
        %p282 = pneg %p102
        %p283 = pneg %p126
        %p284 = pneg %p123
        %p285 = pneg %p147
        %p286 = pneg %p144
        %p287 = pneg %p168
        %p288 = pneg %p165
        %p289 = pneg %p198
        %p290 = pneg %p195
        %s291 = sand.u32 %s185, 1
        %s292 = scalar_lea.sflag [#allocation6], %s291
        %s293 = sand.u32 %s185, 1
        %s294 = smul.addr %s293, 8
        %s295 = scalar_lea.vmem [#allocation7], %s294
        %s296 = smul.u32 2, %s28
        %p297 = scmp.lt.s32.totalorder %s26, 1
        %s298 = scalar_select %p297, %s26, 1
        %p299 = scmp.lt.s32.totalorder %s296, 1
        %s300 = scalar_select %p299, %s296, 1
        %s301 = smul.addr %s300, 2
        %s302 = smul.addr %s298, 4
        %s303 = sadd.s32 %s301, %s302
        %s304 = smul.addr %s303, 4
        %s305 = scalar_lea.vmem %s0, %s304
        %s306 = smul.u32 2, %s28
        %s307 = smul.u32 %s28, %s27
        %s308 = smul.u32 2, %s307
        %v310 = vld [vmem:[%s305] sm:$0xff]
        %v311 = vld [vmem:[%s305 + $0x8] sm:$0xff]
        %v312 = vunpack.c.l.bf16 %v310
        %v313 = vunpack.c.h.bf16 %v310
        %v314 = vunpack.c.l.bf16 %v311
        %v315 = vunpack.c.h.bf16 %v311
        %v316 = vld [vmem:[%s1] ss:$2 sm:$0x3]
        %s317 = scalar_lea.vmem %s1, 1
        %v318 = vld [vmem:[%s317] ss:$2 sm:$0x3]
        %v319 = vadd.f32 %v312, %v313
        %320 = vadd.xlane.f32.xlu0 %v319
        %v321 = vpop.xlane.xlu0 %320
        %v322 = vadd.f32 %v314, %v315
        %323 = vadd.xlane.f32.xlu0 %v322
        %v324 = vpop.xlane.xlu0 %323
        %v325 = vmul.f32 %v321, 0.006802721
        %v326 = vmul.f32 %v324, 0.006802721
        %v327 = vsub.f32 %v312, %v325
        %v328 = vsub.f32 %v313, %v325
        %v329 = vsub.f32 %v314, %v326
        %v330 = vsub.f32 %v315, %v326
        %v331 = vmul.f32 %v327, %v327
        %v332 = vmul.f32 %v328, %v328
        %v333 = vmul.f32 %v329, %v329
        %v334 = vmul.f32 %v330, %v330
        %v335 = vadd.f32 %v331, %v332
        %336 = vadd.xlane.f32.xlu0 %v335
        %v337 = vpop.xlane.xlu0 %336
        %v338 = vadd.f32 %v333, %v334
        %339 = vadd.xlane.f32.xlu0 %v338
        %v340 = vpop.xlane.xlu0 %339
        %v341 = vmul.f32 %v325, %v325
        %v342 = vmul.f32 %v326, %v326
        %v343 = vmul.f32 %v341, 109.0
        %v344 = vmul.f32 %v342, 109.0
        %v345 = vsub.f32 %v337, %v343
        %v346 = vsub.f32 %v340, %v344
        %v347 = vmul.f32 %v345, 0.006802721
        %v348 = vmul.f32 %v346, 0.006802721
        %v349 = vmax.f32 %v347, 0.0
        %v350 = vmax.f32 %v348, 0.0
        %v351 = vadd.f32 %v349, 1e-05
        %v352 = vadd.f32 %v350, 1e-05
        %v353 = vrsqrt.pop %v351
        %v354 = vrsqrt.pop %v352
        %v355 = vmul.f32 %v327, %v353
        %v356 = vmul.f32 %v328, %v353
        %v357 = vmul.f32 %v329, %v354
        %v358 = vmul.f32 %v330, %v354
        %v360 = vlaneseq
        %v361 = vshrl.u32 %v360, 7
        %v362 = vsub.s32 0, %v361
        %v363 = vrot.slane %v316, %v362
        %v364 = vlaneseq
        %v365 = vshrl.u32 %v364, 7
        %v366 = vsub.s32 1, %v365
        %v367 = vrot.slane %v316, %v366
        %v370 = vmul.f32 %v355, %v363
        %v371 = vmul.f32 %v356, %v367
        %v372 = vmul.f32 %v357, %v363
        %v373 = vmul.f32 %v358, %v367
        %v375 = vlaneseq
        %v376 = vshrl.u32 %v375, 7
        %v377 = vsub.s32 0, %v376
        %v378 = vrot.slane %v318, %v377
        %v379 = vlaneseq
        %v380 = vshrl.u32 %v379, 7
        %v381 = vsub.s32 1, %v380
        %v382 = vrot.slane %v318, %v381
        %v385 = vadd.f32 %v370, %v378
        %v386 = vadd.f32 %v371, %v382
        %v387 = vadd.f32 %v372, %v378
        %v388 = vadd.f32 %v373, %v382
        %v389 = vpack.c.bf16 %v387, %v385
        %v390 = vpack.c.bf16 %v388, %v386
        %v391 = vld [vmem:[#allocation4] sm:$0xff]
        %v392 = vld [vmem:[#allocation4 + $0x8] sm:$0xff]
        %v393 = vld [vmem:[#allocation4 + $0x10] sm:$0xff]
        %v394 = vld [vmem:[#allocation4 + $0x18] sm:$0xff]
        %v395 = vld [vmem:[#allocation4 + $0x20] sm:$0xff]
        %v396 = vld [vmem:[#allocation4 + $0x28] sm:$0xff]
        %v397 = vld [vmem:[#allocation4 + $0x30] sm:$0xff]
        %v398 = vld [vmem:[#allocation4 + $0x38] sm:$0xff]
        %v399 = vld [vmem:[#allocation4 + $0x40] sm:$0xff]
        %v400 = vld [vmem:[#allocation4 + $0x48] sm:$0xff]
        %v401 = vld [vmem:[#allocation4 + $0x50] sm:$0xff]
        %v402 = vld [vmem:[#allocation4 + $0x58] sm:$0xff]
        %v403 = vld [vmem:[#allocation4 + $0x60] sm:$0xff]
        %v404 = vld [vmem:[#allocation4 + $0x68] sm:$0xff]
        %v405 = vld [vmem:[#allocation4 + $0x70] sm:$0xff]
        %v406 = vld [vmem:[#allocation4 + $0x78] sm:$0xff]
        %v407 = vld [vmem:[#allocation4 + $0x80] sm:$0xff]
        %v408 = vld [vmem:[#allocation4 + $0x88] sm:$0xff]
        %v409 = vld [vmem:[#allocation4 + $0x90] sm:$0xff]
        %v410 = vld [vmem:[#allocation4 + $0x98] sm:$0xff]
        %v411 = vld [vmem:[#allocation4 + $0xa0] sm:$0xff]
        %v412 = vld [vmem:[#allocation4 + $0xa8] sm:$0xff]
        %v413 = vld [vmem:[#allocation4 + $0xb0] sm:$0xff]
        %v414 = vld [vmem:[#allocation4 + $0xb8] sm:$0xff]
        %v415 = vld [vmem:[#allocation4 + $0xc0] sm:$0xff]
        %v416 = vld [vmem:[#allocation4 + $0xc8] sm:$0xff]
        %v417 = vld [vmem:[#allocation4 + $0xd0] sm:$0xff]
        %v418 = vld [vmem:[#allocation4 + $0xd8] sm:$0xff]
        %v419 = vld [vmem:[#allocation4 + $0xe0] sm:$0xff]
        %v420 = vld [vmem:[#allocation4 + $0xe8] sm:$0xff]
        %v421 = vld [vmem:[#allocation4 + $0xf0] sm:$0xff]
        %v422 = vld [vmem:[#allocation4 + $0xf8] sm:$0xff]
        %v423 = vld [vmem:[%s3] sm:$0x3]
        %v425 = vlaneseq
        %v426 = vshrl.u32 %v425, 7
        %v427 = vsub.s32 0, %v426
        %v428 = vrot.slane %v423, %v427
        %v429 = vlaneseq
        %v430 = vshrl.u32 %v429, 7
        %v431 = vsub.s32 1, %v430
        %v432 = vrot.slane %v423, %v431
        %v467 = vunpack.c.l.b16 %v391
        %v468 = vunpack.c.h.b16 %v391
        %v469 = vunpack.c.l.b16 %v392
        %v470 = vunpack.c.h.b16 %v392
        %v471 = vunpack.c.l.b16 %v393
        %v472 = vunpack.c.h.b16 %v393
        %v473 = vunpack.c.l.b16 %v394
        %v474 = vunpack.c.h.b16 %v394
        %v475 = vunpack.c.l.b16 %v395
        %v476 = vunpack.c.h.b16 %v395
        %v477 = vunpack.c.l.b16 %v396
        %v478 = vunpack.c.h.b16 %v396
        %v479 = vunpack.c.l.b16 %v397
        %v480 = vunpack.c.h.b16 %v397
        %v481 = vunpack.c.l.b16 %v398
        %v482 = vunpack.c.h.b16 %v398
        %v483 = vunpack.c.l.b16 %v399
        %v484 = vunpack.c.h.b16 %v399
        %v485 = vunpack.c.l.b16 %v400
        %v486 = vunpack.c.h.b16 %v400
        %v487 = vunpack.c.l.b16 %v401
        %v488 = vunpack.c.h.b16 %v401
        %v489 = vunpack.c.l.b16 %v402
        %v490 = vunpack.c.h.b16 %v402
        %v491 = vunpack.c.l.b16 %v403
        %v492 = vunpack.c.h.b16 %v403
        %v493 = vunpack.c.l.b16 %v404
        %v494 = vunpack.c.h.b16 %v404
        %v495 = vunpack.c.l.b16 %v405
        %v496 = vunpack.c.h.b16 %v405
        %v497 = vunpack.c.l.b16 %v406
        %v498 = vunpack.c.h.b16 %v406
        %v499 = vunpack.c.l.b16 %v407
        %v500 = vunpack.c.h.b16 %v407
        %v501 = vunpack.c.l.b16 %v408
        %v502 = vunpack.c.h.b16 %v408
        %v503 = vunpack.c.l.b16 %v409
        %v504 = vunpack.c.h.b16 %v409
        %v505 = vunpack.c.l.b16 %v410
        %v506 = vunpack.c.h.b16 %v410
        %v507 = vunpack.c.l.b16 %v411
        %v508 = vunpack.c.h.b16 %v411
        %v509 = vunpack.c.l.b16 %v412
        %v510 = vunpack.c.h.b16 %v412
        %v511 = vunpack.c.l.b16 %v413
        %v512 = vunpack.c.h.b16 %v413
        %v513 = vunpack.c.l.b16 %v414
        %v514 = vunpack.c.h.b16 %v414
        %v515 = vunpack.c.l.b16 %v415
        %v516 = vunpack.c.h.b16 %v415
        %v517 = vunpack.c.l.b16 %v416
        %v518 = vunpack.c.h.b16 %v416
        %v519 = vunpack.c.l.b16 %v417
        %v520 = vunpack.c.h.b16 %v417
        %v521 = vunpack.c.l.b16 %v418
        %v522 = vunpack.c.h.b16 %v418
        %v523 = vunpack.c.l.b16 %v419
        %v524 = vunpack.c.h.b16 %v419
        %v525 = vunpack.c.l.b16 %v420
        %v526 = vunpack.c.h.b16 %v420
        %v527 = vunpack.c.l.b16 %v421
        %v528 = vunpack.c.h.b16 %v421
        %v529 = vunpack.c.l.b16 %v422
        %v530 = vunpack.c.h.b16 %v422
        %v531 = vpack.c.b16 %v469, %v467
        %v532 = vpack.c.b16 %v470, %v468
        %v533 = vpack.c.b16 %v473, %v471
        %v534 = vpack.c.b16 %v474, %v472
        %v535 = vpack.c.b16 %v477, %v475
        %v536 = vpack.c.b16 %v478, %v476
        %v537 = vpack.c.b16 %v481, %v479
        %v538 = vpack.c.b16 %v482, %v480
        %v539 = vpack.c.b16 %v485, %v483
        %v540 = vpack.c.b16 %v486, %v484
        %v541 = vpack.c.b16 %v489, %v487
        %v542 = vpack.c.b16 %v490, %v488
        %v543 = vpack.c.b16 %v493, %v491
        %v544 = vpack.c.b16 %v494, %v492
        %v545 = vpack.c.b16 %v497, %v495
        %v546 = vpack.c.b16 %v498, %v496
        %v547 = vpack.c.b16 %v501, %v499
        %v548 = vpack.c.b16 %v502, %v500
        %v549 = vpack.c.b16 %v505, %v503
        %v550 = vpack.c.b16 %v506, %v504
        %v551 = vpack.c.b16 %v509, %v507
        %v552 = vpack.c.b16 %v510, %v508
        %v553 = vpack.c.b16 %v513, %v511
        %v554 = vpack.c.b16 %v514, %v512
        %v555 = vpack.c.b16 %v517, %v515
        %v556 = vpack.c.b16 %v518, %v516
        %v557 = vpack.c.b16 %v521, %v519
        %v558 = vpack.c.b16 %v522, %v520
        %v559 = vpack.c.b16 %v525, %v523
        %v560 = vpack.c.b16 %v526, %v524
        %v561 = vpack.c.b16 %v529, %v527
        %v562 = vpack.c.b16 %v530, %v528
        %595 = vmatprep.subr.bf16.mxu0 %v532
        %596 = vmatpush1.bf16.msra.mxu0 %v531
        %597 = vmatprep.subr.bf16.mxu0 %v534
        %598 = vmatpush1.bf16.msra.mxu0 %v533
        %599 = vmatprep.subr.bf16.mxu0 %v536
        %600 = vmatpush1.bf16.msra.mxu0 %v535
        %601 = vmatprep.subr.bf16.mxu0 %v538
        %602 = vmatpush1.bf16.msra.mxu0 %v537
        %603 = vmatprep.subr.bf16.mxu0 %v540
        %604 = vmatpush1.bf16.msra.mxu0 %v539
        %605 = vmatprep.subr.bf16.mxu0 %v542
        %606 = vmatpush1.bf16.msra.mxu0 %v541
        %607 = vmatprep.subr.bf16.mxu0 %v544
        %608 = vmatpush1.bf16.msra.mxu0 %v543
        %609 = vmatprep.subr.bf16.mxu0 %v546
        %610 = vmatpush1.bf16.msra.mxu0 %v545
        %611 = vmatprep.subr.bf16.mxu0 %v548
        %612 = vmatpush1.bf16.msra.mxu0 %v547
        %613 = vmatprep.subr.bf16.mxu0 %v550
        %614 = vmatpush1.bf16.msra.mxu0 %v549
        %615 = vmatprep.subr.bf16.mxu0 %v552
        %616 = vmatpush1.bf16.msra.mxu0 %v551
        %617 = vmatprep.subr.bf16.mxu0 %v554
        %618 = vmatpush1.bf16.msra.mxu0 %v553
        %619 = vmatprep.subr.bf16.mxu0 %v556
        %620 = vmatpush1.bf16.msra.mxu0 %v555
        %621 = vmatprep.subr.bf16.mxu0 %v558
        %622 = vmatpush1.bf16.msra.mxu0 %v557
        %623 = vmatprep.subr.bf16.mxu0 %v560
        %624 = vmatpush1.bf16.msra.mxu0 %v559
        %625 = vmatprep.subr.bf16.mxu0 %v562
        %626 = vmatpush1.bf16.msra.mxu0 %v561
        %627 = vmatprep.mubr.bf16.mxu0 %v390
        %628 = vmatmul.mubr.bf16.gmra.mrb[0].mxu0 %v389
        %v629 = vpop.f32.mrb[0].mxu0
        %v630 = vadd.f32 %v428, %v629
        %v631 = vpop.f32.mrb[0].mxu0
        %v632 = vadd.f32 %v432, %v631
        %v633 = vpop.f32.mrb[0].mxu0
        %v634 = vadd.f32 %v428, %v633
        %v635 = vpop.f32.mrb[0].mxu0
        %v636 = vadd.f32 %v432, %v635
        %637 = vdwg.mxu0
        %p638 = scmp.eq.s32.totalorder %s27, 0
        %p639 = scmp.eq.s32.totalorder %s28, 0
        %p640 = pnand %p638, %p639
        %p641 = pneg %p640
        // Predicated region
        $region49: #{tpu_custom_call.1} parent=43 // pred_check
          _
        $region50: #{tpu_custom_call.1} parent=43 // pred_check_branch
          %643 = sbr.rel (%p640) target = $region52
        $region51: #{tpu_custom_call.1} parent=43 // pred_region
          %vm644 = vcmask 253952
          %645 = vst.msk [vmem:[#allocation2] sm:$0x1] %vm644, 0.0
          %vm646 = vcmask 523264
          %647 = vst.msk [vmem:[#allocation3] sm:$0xff] %vm646, 0.0
          %648 = vst.msk [vmem:[#allocation3 + $0x8] sm:$0xff] %vm646, 0.0
          %649 = vst.msk [vmem:[#allocation3 + $0x10] sm:$0xff] %vm646, 0.0
          %650 = vst.msk [vmem:[#allocation3 + $0x18] sm:$0xff] %vm646, 0.0
        $region52: #{tpu_custom_call.1} parent=43 // pred_fallthru
          _
        // Predicated region
        $region53: #{tpu_custom_call.1} parent=43 // pred_check
          %p651 = pneg %p638
        $region54: #{tpu_custom_call.1} parent=43 // pred_check_branch
          %653 = sbr.rel (%p651) target = $region56
        $region55: #{tpu_custom_call.1} parent=43 // pred_region
          %v654 = vmul.f32 %v630, %v630
          %v655 = vmul.f32 %v634, %v634
          %vm656 = vcmask 523264
          %v657 = vsel %vm656, %v654, 0.0
          %658 = vadd.xlane.f32.xlu0 %v657
          %v659 = vpop.xlane.xlu0 %658
          %v660 = vsel %vm656, %v655, 0.0
          %661 = vadd.xlane.f32.xlu0 %v660
          %v662 = vpop.xlane.xlu0 %661
          %v663 = vmul.f32 %v659, 0.5
          %v664 = vmul.f32 %v662, 0.5
          %v665 = vsub.f32 %v632, %v663
          %v666 = vsub.f32 %v636, %v664
          %v667 = vmul.f32 %v665, 1.442695
          %v668 = vpow.pop %v667
          %v669 = vmul.f32 %v666, 1.442695
          %v670 = vpow.pop %v669
          %v671 = vmul.f32 %v668, 0.17677669
          %v672 = vmul.f32 %v670, 0.17677669
          %v673 = vlaneseq
          %v674 = vshrl.u32 %v673, 7
          %v675 = vadd.s32 %v674, 8
          %s676 = smul.u32 %s28, 16
          %s677 = ssub.s32 16, %s676
          %v678 = vstv %s677
          %vm679 = vcmp.lt.s32.totalorder %v674, %v678
          %vm680 = vcmp.lt.s32.totalorder %v675, %v678
          %v681 = vsel %vm679, %v671, 0.0
          %v682 = vsel %vm680, %v672, 0.0
          %v683 = vld [vmem:[#allocation2] sm:$0x1]
          %vm684 = vcmask 785920
          %v685 = vsel %vm684, %v681, 0.0
          %v686 = vsel %vm684, %v682, 0.0
          %v687 = vadd.f32 %v685, %v686
          %v688 = vrot.slane %v687, 4
          %v689 = vadd.f32 %v687, %v688
          %v690 = vrot.slane %v689, 2
          %v691 = vadd.f32 %v689, %v690
          %v692 = vrot.slane %v691, 1
          %v693 = vadd.f32 %v691, %v692
          %v696 = vunpack.c.l.s4 1966171168
          %v697 = vunpack.c.0.s8 %v696
          %v698 = vlaneseq
          %v699 = vshrl.u32 %v698, 7
          %v700 = vsub.s32 %v697, %v699
          %v701 = vrot.slane %v693, %v700
          %v703 = vunpack.c.l.s4 1966171168
          %v704 = vunpack.c.0.s8 %v703
          %v705 = vlaneseq
          %v706 = vshrl.u32 %v705, 7
          %v707 = vsub.s32 %v704, %v706
          %v708 = vrot.slane %v701, %v707
          %709 = vrot.lane.b32.xlu0 %v708, 64
          %v710 = vpop.permute.xlu0 %709
          %v712 = vadd.f32 %v683, %v710
          %vm713 = vcmask 253952
          %714 = vst.msk [vmem:[#allocation2] sm:$0x1] %vm713, %v712
          %v715 = vld [vmem:[#allocation3] sm:$0xff]
          %v716 = vld [vmem:[#allocation3 + $0x8] sm:$0xff]
          %v717 = vld [vmem:[#allocation3 + $0x10] sm:$0xff]
          %v718 = vld [vmem:[#allocation3 + $0x18] sm:$0xff]
          %721 = vrot.lane.b32.xlu0 %v681, 64
          %v722 = vpop.permute.xlu0 %721
          %723 = vrot.lane.b32.xlu0 %v682, 64
          %v724 = vpop.permute.xlu0 %723
          %727 = vxpose.xlu0.b32.start [1/16] %v722, 128
          %728 = vxpose.xlu0.b32.cont [2/16] %v724, 128
          %729 = vxpose.xlu0.b32.cont [3/16] 0.0, 128
          %730 = vxpose.xlu0.b32.cont [4/16] 0.0, 128
          %731 = vxpose.xlu0.b32.cont [5/16] 0.0, 128
          %732 = vxpose.xlu0.b32.cont [6/16] 0.0, 128
          %733 = vxpose.xlu0.b32.cont [7/16] 0.0, 128
          %734 = vxpose.xlu0.b32.cont [8/16] 0.0, 128
          %735 = vxpose.xlu0.b32.cont [9/16] 0.0, 128
          %736 = vxpose.xlu0.b32.cont [10/16] 0.0, 128
          %737 = vxpose.xlu0.b32.cont [11/16] 0.0, 128
          %738 = vxpose.xlu0.b32.cont [12/16] 0.0, 128
          %739 = vxpose.xlu0.b32.cont [13/16] 0.0, 128
          %740 = vxpose.xlu0.b32.cont [14/16] 0.0, 128
          %741 = vxpose.xlu0.b32.cont [15/16] 0.0, 128
          %742 = vxpose.xlu0.b32.end [16/16] 0.0, 128
          %v743 = vpop.trf.xlu0
          %v744 = vpop.trf.xlu0
          %v745 = vpop.trf.xlu0
          %v746 = vpop.trf.xlu0
          %v747 = vpop.trf.xlu0
          %v748 = vpop.trf.xlu0
          %v749 = vpop.trf.xlu0
          %v750 = vpop.trf.xlu0
          %v751 = vpop.trf.xlu0
          %v752 = vpop.trf.xlu0
          %v753 = vpop.trf.xlu0
          %v754 = vpop.trf.xlu0
          %v755 = vpop.trf.xlu0
          %v756 = vpop.trf.xlu0
          %v757 = vpop.trf.xlu0
          %v758 = vpop.trf.xlu0
          %vm759 = vcmask 130048
          %v761 = vsel %vm759, %v743, 0
          %v764 = vsel %vm759, %v744, 0
          %v767 = vsel %vm759, %v745, 0
          %v770 = vsel %vm759, %v746, 0
          %772 = vmatprep.subr.mxu0 0.0
          %773 = vmatpush1.msra.mxu0 %v632
          %774 = vmatprep.subr.mxu0 0.0
          %775 = vmatpush1.msra.mxu0 %v636
          %776 = vmatprep.subr.mxu0 0.0
          %777 = vmatpush1.msra.mxu0 0.0
          %778 = vmatprep.subr.mxu0 0.0
          %779 = vmatpush1.msra.mxu0 0.0
          %780 = vmatprep.subr.mxu0 0.0
          %781 = vmatpush1.msra.mxu0 0.0
          %782 = vmatprep.subr.mxu0 0.0
          %783 = vmatpush1.msra.mxu0 0.0
          %784 = vmatprep.subr.mxu0 0.0
          %785 = vmatpush1.msra.mxu0 0.0
          %786 = vmatprep.subr.mxu0 0.0
          %787 = vmatpush1.msra.mxu0 0.0
          %788 = vmatprep.subr.mxu0 0.0
          %789 = vmatpush1.msra.mxu0 0.0
          %790 = vmatprep.subr.mxu0 0.0
          %791 = vmatpush1.msra.mxu0 0.0
          %792 = vmatprep.subr.mxu0 0.0
          %793 = vmatpush1.msra.mxu0 0.0
          %794 = vmatprep.subr.mxu0 0.0
          %795 = vmatpush1.msra.mxu0 0.0
          %796 = vmatprep.subr.mxu0 0.0
          %797 = vmatpush1.msra.mxu0 0.0
          %798 = vmatprep.subr.mxu0 0.0
          %799 = vmatpush1.msra.mxu0 0.0
          %800 = vmatprep.subr.mxu0 0.0
          %801 = vmatpush1.msra.mxu0 0.0
          %802 = vmatprep.subr.mxu0 0.0
          %803 = vmatpush1.msra.mxu0 0.0
          %804 = vmatprep.subr.mxu0 0.0
          %805 = vmatpush1.msra.mxu0 0.0
          %806 = vmatprep.subr.mxu0 0.0
          %807 = vmatpush1.msra.mxu0 0.0
          %808 = vmatprep.subr.mxu0 0.0
          %809 = vmatpush1.msra.mxu0 0.0
          %810 = vmatprep.subr.mxu0 0.0
          %811 = vmatpush1.msra.mxu0 0.0
          %812 = vmatprep.subr.mxu0 0.0
          %813 = vmatpush1.msra.mxu0 0.0
          %814 = vmatprep.subr.mxu0 0.0
          %815 = vmatpush1.msra.mxu0 0.0
          %816 = vmatprep.subr.mxu0 0.0
          %817 = vmatpush1.msra.mxu0 0.0
          %818 = vmatprep.subr.mxu0 0.0
          %819 = vmatpush1.msra.mxu0 0.0
          %820 = vmatprep.subr.mxu0 0.0
          %821 = vmatpush1.msra.mxu0 0.0
          %822 = vmatprep.subr.mxu0 0.0
          %823 = vmatpush1.msra.mxu0 0.0
          %824 = vmatprep.subr.mxu0 0.0
          %825 = vmatpush1.msra.mxu0 0.0
          %826 = vmatprep.subr.mxu0 0.0
          %827 = vmatpush1.msra.mxu0 0.0
          %828 = vmatprep.subr.mxu0 0.0
          %829 = vmatpush1.msra.mxu0 0.0
          %830 = vmatprep.subr.mxu0 0.0
          %831 = vmatpush1.msra.mxu0 0.0
          %832 = vmatprep.subr.mxu0 0.0
          %833 = vmatpush1.msra.mxu0 0.0
          %834 = vmatprep.subr.mxu0 0.0
          %835 = vmatpush1.msra.mxu0 0.0
          %836 = vmatprep.mubr.f32.mxu0 0.0
          %837 = vmatmul.mubr.f32.gmra.mrb[0].mxu0 %v761
          %v838 = vpop.f32.mrb[0].mxu0
          %v839 = vadd.f32 0.0, %v838
          %v840 = vpop.f32.mrb[0].mxu0
          %841 = vmatprep.mubr.f32.mxu0 0.0
          %842 = vmatmul.mubr.f32.gmra.mrb[0].mxu0 %v764
          %v843 = vpop.f32.mrb[0].mxu0
          %v844 = vadd.f32 0.0, %v843
          %v845 = vpop.f32.mrb[0].mxu0
          %846 = vmatprep.mubr.f32.mxu0 0.0
          %847 = vmatmul.mubr.f32.gmra.mrb[0].mxu0 %v767
          %v848 = vpop.f32.mrb[0].mxu0
          %v849 = vadd.f32 0.0, %v848
          %v850 = vpop.f32.mrb[0].mxu0
          %851 = vmatprep.mubr.f32.mxu0 0.0
          %852 = vmatmul.mubr.f32.gmra.mrb[0].mxu0 %v770
          %v853 = vpop.f32.mrb[0].mxu0
          %v854 = vadd.f32 0.0, %v853
          %v855 = vpop.f32.mrb[0].mxu0
          %856 = vdwg.mxu0
          %v857 = vadd.f32 %v715, %v839
          %v858 = vadd.f32 %v716, %v844
          %v859 = vadd.f32 %v717, %v849
          %v860 = vadd.f32 %v718, %v854
          %861 = vst.msk [vmem:[#allocation3] sm:$0xff] %vm656, %v857
          %862 = vst.msk [vmem:[#allocation3 + $0x8] sm:$0xff] %vm656, %v858
          %863 = vst.msk [vmem:[#allocation3 + $0x10] sm:$0xff] %vm656, %v859
          %864 = vst.msk [vmem:[#allocation3 + $0x18] sm:$0xff] %vm656, %v860
        $region56: #{tpu_custom_call.1} parent=43 // pred_fallthru
          _
        %p865 = scmp.eq.s32.totalorder %s27, 1
        // Predicated region
        $region57: #{tpu_custom_call.1} parent=43 // pred_check
          %p866 = pneg %p865
        $region58: #{tpu_custom_call.1} parent=43 // pred_check_branch
          %868 = sbr.rel (%p866) target = $region60
        $region59: #{tpu_custom_call.1} parent=43 // pred_region
          %v869 = vmul.f32 %v630, %v630
          %v870 = vmul.f32 %v634, %v634
          %873 = vrot.lane.b32.xlu0 %v869, 64
          %v874 = vpop.permute.xlu0 %873
          %875 = vrot.lane.b32.xlu0 %v870, 64
          %v876 = vpop.permute.xlu0 %875
          %vm879 = vcmask 523264
          %v880 = vsel %vm879, %v874, 0.0
          %881 = vadd.xlane.f32.xlu0 %v880
          %v882 = vpop.xlane.xlu0 %881
          %v883 = vsel %vm879, %v876, 0.0
          %884 = vadd.xlane.f32.xlu0 %v883
          %v885 = vpop.xlane.xlu0 %884
          %v886 = vmul.f32 %v882, 0.5
          %v887 = vmul.f32 %v885, 0.5
          %v888 = vsub.f32 %v632, %v886
          %v889 = vsub.f32 %v636, %v887
          %v890 = vmul.f32 %v888, 1.442695
          %v891 = vpow.pop %v890
          %v892 = vmul.f32 %v889, 1.442695
          %v893 = vpow.pop %v892
          %v894 = vmul.f32 %v891, 0.17677669
          %v895 = vmul.f32 %v893, 0.17677669
          %v896 = vld [vmem:[#allocation2] sm:$0x1]
          %v898 = vlaneseq
          %v899 = vshrl.u32 %v898, 7
          %v900 = vsub.s32 0, %v899
          %v901 = vrot.slane %v896, %v900
          %902 = vrot.lane.b32.xlu0 %v901, 96
          %v903 = vpop.permute.xlu0 %902
          %v905 = vmul.f32 %v894, %v903
          %v906 = vmul.f32 %v895, %v903
          %909 = vrot.lane.b32.xlu0 %v905, 32
          %v910 = vpop.permute.xlu0 %909
          %911 = vrot.lane.b32.xlu0 %v906, 32
          %v912 = vpop.permute.xlu0 %911
          %vm915 = vcmask 261120
          %v916 = vsel %vm915, %v910, 0.0
          %917 = vadd.xlane.f32.xlu0 %v916
          %v918 = vpop.xlane.xlu0 %917
          %v919 = vsel %vm915, %v912, 0.0
          %920 = vadd.xlane.f32.xlu0 %v919
          %v921 = vpop.xlane.xlu0 %920
          %v922 = vld [vmem:[#allocation3] sm:$0xff]
          %v923 = vld [vmem:[#allocation3 + $0x8] sm:$0xff]
          %v924 = vld [vmem:[#allocation3 + $0x10] sm:$0xff]
          %v925 = vld [vmem:[#allocation3 + $0x18] sm:$0xff]
          %928 = vrot.lane.b32.xlu0 %v894, 32
          %v929 = vpop.permute.xlu0 %928
          %930 = vrot.lane.b32.xlu0 %v895, 32
          %v931 = vpop.permute.xlu0 %930
          %v932 = vsel %vm915, %v929, 0
          %v934 = vsel %vm915, %v931, 0
          %936 = vmatprep.subr.mxu0 0.0
          %937 = vmatpush1.msra.mxu0 %v922
          %938 = vmatprep.subr.mxu0 0.0
          %939 = vmatpush1.msra.mxu0 %v923
          %940 = vmatprep.subr.mxu0 0.0
          %941 = vmatpush1.msra.mxu0 %v924
          %942 = vmatprep.subr.mxu0 0.0
          %943 = vmatpush1.msra.mxu0 %v925
          %944 = vmatprep.subr.mxu0 0.0
          %945 = vmatpush1.msra.mxu0 0.0
          %946 = vmatprep.subr.mxu0 0.0
          %947 = vmatpush1.msra.mxu0 0.0
          %948 = vmatprep.subr.mxu0 0.0
          %949 = vmatpush1.msra.mxu0 0.0
          %950 = vmatprep.subr.mxu0 0.0
          %951 = vmatpush1.msra.mxu0 0.0
          %952 = vmatprep.subr.mxu0 0.0
          %953 = vmatpush1.msra.mxu0 0.0
          %954 = vmatprep.subr.mxu0 0.0
          %955 = vmatpush1.msra.mxu0 0.0
          %956 = vmatprep.subr.mxu0 0.0
          %957 = vmatpush1.msra.mxu0 0.0
          %958 = vmatprep.subr.mxu0 0.0
          %959 = vmatpush1.msra.mxu0 0.0
          %960 = vmatprep.subr.mxu0 0.0
          %961 = vmatpush1.msra.mxu0 0.0
          %962 = vmatprep.subr.mxu0 0.0
          %963 = vmatpush1.msra.mxu0 0.0
          %964 = vmatprep.subr.mxu0 0.0
          %965 = vmatpush1.msra.mxu0 0.0
          %966 = vmatprep.subr.mxu0 0.0
          %967 = vmatpush1.msra.mxu0 0.0
          %968 = vmatprep.subr.mxu0 0.0
          %969 = vmatpush1.msra.mxu0 0.0
          %970 = vmatprep.subr.mxu0 0.0
          %971 = vmatpush1.msra.mxu0 0.0
          %972 = vmatprep.subr.mxu0 0.0
          %973 = vmatpush1.msra.mxu0 0.0
          %974 = vmatprep.subr.mxu0 0.0
          %975 = vmatpush1.msra.mxu0 0.0
          %976 = vmatprep.subr.mxu0 0.0
          %977 = vmatpush1.msra.mxu0 0.0
          %978 = vmatprep.subr.mxu0 0.0
          %979 = vmatpush1.msra.mxu0 0.0
          %980 = vmatprep.subr.mxu0 0.0
          %981 = vmatpush1.msra.mxu0 0.0
          %982 = vmatprep.subr.mxu0 0.0
          %983 = vmatpush1.msra.mxu0 0.0
          %984 = vmatprep.subr.mxu0 0.0
          %985 = vmatpush1.msra.mxu0 0.0
          %986 = vmatprep.subr.mxu0 0.0
          %987 = vmatpush1.msra.mxu0 0.0
          %988 = vmatprep.subr.mxu0 0.0
          %989 = vmatpush1.msra.mxu0 0.0
          %990 = vmatprep.subr.mxu0 0.0
          %991 = vmatpush1.msra.mxu0 0.0
          %992 = vmatprep.subr.mxu0 0.0
          %993 = vmatpush1.msra.mxu0 0.0
          %994 = vmatprep.subr.mxu0 0.0
          %995 = vmatpush1.msra.mxu0 0.0
          %996 = vmatprep.subr.mxu0 0.0
          %997 = vmatpush1.msra.mxu0 0.0
          %998 = vmatprep.subr.mxu0 0.0
          %999 = vmatpush1.msra.mxu0 0.0
          %1000 = vmatprep.mubr.f32.mxu0 0.0
          %1001 = vmatmul.mubr.f32.gmra.mrb[0].mxu0 %v932
          %v1002 = vpop.f32.mrb[0].mxu0
          %v1003 = vadd.f32 0.0, %v1002
          %v1004 = vpop.f32.mrb[0].mxu0
          %1005 = vmatprep.mubr.f32.mxu0 0.0
          %1006 = vmatmul.mubr.f32.gmra.mrb[0].mxu0 %v934
          %v1007 = vpop.f32.mrb[0].mxu0
          %v1008 = vadd.f32 0.0, %v1007
          %v1009 = vpop.f32.mrb[0].mxu0
          %1010 = vdwg.mxu0
          %v1011 = vadd.f32 %v918, 1e-08
          %v1012 = vadd.f32 %v921, 1e-08
          %v1013 = vrcp.pop %v1011
          %v1014 = vmul.f32 %v1003, %v1013
          %v1015 = vrcp.pop %v1012
          %v1016 = vmul.f32 %v1008, %v1015
          %v1017 = vld [vmem:[%s4] sm:$0xf]
          %v1018 = vld [vmem:[%s4 + $0x4] sm:$0xf]
          %v1019 = vld [vmem:[%s4 + $0x8] sm:$0xf]
          %v1020 = vld [vmem:[%s4 + $0xc] sm:$0xf]
          %v1021 = vld [vmem:[%s4 + $0x10] sm:$0xf]
          %v1022 = vld [vmem:[%s4 + $0x14] sm:$0xf]
          %v1023 = vld [vmem:[%s4 + $0x18] sm:$0xf]
          %v1024 = vld [vmem:[%s4 + $0x1c] sm:$0xf]
          %v1025 = vld [vmem:[%s4 + $0x20] sm:$0xf]
          %v1026 = vld [vmem:[%s4 + $0x24] sm:$0xf]
          %v1027 = vld [vmem:[%s4 + $0x28] sm:$0xf]
          %v1028 = vld [vmem:[%s4 + $0x2c] sm:$0xf]
          %v1029 = vld [vmem:[%s4 + $0x30] sm:$0xf]
          %v1030 = vld [vmem:[%s4 + $0x34] sm:$0xf]
          %v1031 = vld [vmem:[%s4 + $0x38] sm:$0xf]
          %v1032 = vld [vmem:[%s4 + $0x3c] sm:$0xf]
          %v1033 = vld [vmem:[%s4 + $0x40] sm:$0xf]
          %v1034 = vld [vmem:[%s4 + $0x44] sm:$0xf]
          %v1035 = vld [vmem:[%s4 + $0x48] sm:$0xf]
          %v1036 = vld [vmem:[%s4 + $0x4c] sm:$0xf]
          %v1037 = vld [vmem:[%s4 + $0x50] sm:$0xf]
          %v1038 = vld [vmem:[%s4 + $0x54] sm:$0xf]
          %v1039 = vld [vmem:[%s4 + $0x58] sm:$0xf]
          %v1040 = vld [vmem:[%s4 + $0x5c] sm:$0xf]
          %v1041 = vld [vmem:[%s5] sm:$0xff]
          %v1042 = vpack.c.bf16 %v1016, %v1014
          %v1043 = vlaneseq
          %v1044 = vshrl.u32 %v1043, 7
          %v1045 = vsub.s32 0, %v1044
          %v1046 = vrot.slane %v1041, %v1045
          %v1055 = vunpack.c.l.b16 %v1017
          %v1056 = vunpack.c.l.b16 %v1018
          %v1057 = vunpack.c.l.b16 %v1019
          %v1058 = vunpack.c.l.b16 %v1020
          %v1059 = vunpack.c.l.b16 %v1021
          %v1060 = vunpack.c.l.b16 %v1022
          %v1061 = vunpack.c.l.b16 %v1023
          %v1062 = vunpack.c.l.b16 %v1024
          %v1063 = vpack.c.b16 %v1056, %v1055
          %v1064 = vpack.c.b16 %v1058, %v1057
          %v1065 = vpack.c.b16 %v1060, %v1059
          %v1066 = vpack.c.b16 %v1062, %v1061
          %v1072 = vsel %vm879, %v1042, 0
          %1074 = vmatprep.subr.bf16.mxu0 0
          %1075 = vmatpush1.bf16.msra.mxu0 %v1063
          %1076 = vmatprep.subr.bf16.mxu0 0
          %1077 = vmatpush1.bf16.msra.mxu0 %v1064
          %1078 = vmatprep.subr.bf16.mxu0 0
          %1079 = vmatpush1.bf16.msra.mxu0 %v1065
          %1080 = vmatprep.subr.bf16.mxu0 0
          %1081 = vmatpush1.bf16.msra.mxu0 %v1066
          %1082 = vmatprep.subr.bf16.mxu0 0
          %1083 = vmatpush1.bf16.msra.mxu0 0
          %1084 = vmatprep.subr.bf16.mxu0 0
          %1085 = vmatpush1.bf16.msra.mxu0 0
          %1086 = vmatprep.subr.bf16.mxu0 0
          %1087 = vmatpush1.bf16.msra.mxu0 0
          %1088 = vmatprep.subr.bf16.mxu0 0
          %1089 = vmatpush1.bf16.msra.mxu0 0
          %1090 = vmatprep.subr.bf16.mxu0 0
          %1091 = vmatpush1.bf16.msra.mxu0 0
          %1092 = vmatprep.subr.bf16.mxu0 0
          %1093 = vmatpush1.bf16.msra.mxu0 0
          %1094 = vmatprep.subr.bf16.mxu0 0
          %1095 = vmatpush1.bf16.msra.mxu0 0
          %1096 = vmatprep.subr.bf16.mxu0 0
          %1097 = vmatpush1.bf16.msra.mxu0 0
          %1098 = vmatprep.subr.bf16.mxu0 0
          %1099 = vmatpush1.bf16.msra.mxu0 0
          %1100 = vmatprep.subr.bf16.mxu0 0
          %1101 = vmatpush1.bf16.msra.mxu0 0
          %1102 = vmatprep.subr.bf16.mxu0 0
          %1103 = vmatpush1.bf16.msra.mxu0 0
          %1104 = vmatprep.subr.bf16.mxu0 0
          %1105 = vmatpush1.bf16.msra.mxu0 0
          %1106 = vmatprep.mubr.bf16.mxu0 0
          %1107 = vmatmul.mubr.bf16.gmra.mrb[0].mxu0 %v1072
          %v1108 = vpop.f32.mrb[0].mxu0
          %v1109 = vadd.f32 %v1046, %v1108
          %v1110 = vpop.f32.mrb[0].mxu0
          %v1111 = vpop.f32.mrb[0].mxu0
          %v1112 = vadd.f32 %v1046, %v1111
          %v1113 = vpop.f32.mrb[0].mxu0
          %1114 = vdwg.mxu0
          %v1115 = vadd.f32 %v632, %v1109
          %v1116 = vadd.f32 %v636, %v1112
          %v1117 = vsel %vm879, %v1115, 0.0
          %1118 = vadd.xlane.f32.xlu0 %v1117
          %v1119 = vpop.xlane.xlu0 %1118
          %v1120 = vsel %vm879, %v1116, 0.0
          %1121 = vadd.xlane.f32.xlu0 %v1120
          %v1122 = vpop.xlane.xlu0 %1121
          %v1123 = vmul.f32 %v1119, 0.015625
          %v1124 = vmul.f32 %v1122, 0.015625
          %v1125 = vsub.f32 %v1115, %v1123
          %v1126 = vsub.f32 %v1116, %v1124
          %v1127 = vmul.f32 %v1125, %v1125
          %v1128 = vmul.f32 %v1126, %v1126
          %v1129 = vsel %vm879, %v1127, 0.0
          %1130 = vadd.xlane.f32.xlu0 %v1129
          %v1131 = vpop.xlane.xlu0 %1130
          %v1132 = vsel %vm879, %v1128, 0.0
          %1133 = vadd.xlane.f32.xlu0 %v1132
          %v1134 = vpop.xlane.xlu0 %1133
          %v1135 = vmul.f32 %v1131, 0.015625
          %v1136 = vmul.f32 %v1134, 0.015625
          %v1137 = vmax.f32 %v1135, 0.0
          %v1138 = vmax.f32 %v1136, 0.0
          %v1139 = vadd.f32 %v1137, 1e-05
          %v1140 = vadd.f32 %v1138, 1e-05
          %v1141 = vrsqrt.pop %v1139
          %v1142 = vrsqrt.pop %v1140
          %v1143 = vmul.f32 %v1125, %v1141
          %v1144 = vmul.f32 %v1126, %v1142
          %v1145 = vlaneseq
          %v1146 = vshrl.u32 %v1145, 7
          %v1147 = vsub.s32 1, %v1146
          %v1148 = vrot.slane %v1041, %v1147
          %v1149 = vmul.f32 %v1143, %v1148
          %v1150 = vmul.f32 %v1144, %v1148
          %v1151 = vlaneseq
          %v1152 = vshrl.u32 %v1151, 7
          %v1153 = vsub.s32 2, %v1152
          %v1154 = vrot.slane %v1041, %v1153
          %v1155 = vadd.f32 %v1149, %v1154
          %v1156 = vadd.f32 %v1150, %v1154
          %v1157 = vpack.c.bf16 %v1156, %v1155
          %v1158 = vlaneseq
          %v1159 = vshrl.u32 %v1158, 7
          %v1160 = vsub.s32 3, %v1159
          %v1161 = vrot.slane %v1041, %v1160
          %v1170 = vunpack.c.l.b16 %v1025
          %v1171 = vunpack.c.l.b16 %v1026
          %v1172 = vunpack.c.l.b16 %v1027
          %v1173 = vunpack.c.l.b16 %v1028
          %v1174 = vunpack.c.l.b16 %v1029
          %v1175 = vunpack.c.l.b16 %v1030
          %v1176 = vunpack.c.l.b16 %v1031
          %v1177 = vunpack.c.l.b16 %v1032
          %v1178 = vpack.c.b16 %v1171, %v1170
          %v1179 = vpack.c.b16 %v1173, %v1172
          %v1180 = vpack.c.b16 %v1175, %v1174
          %v1181 = vpack.c.b16 %v1177, %v1176
          %v1187 = vsel %vm879, %v1157, 0
          %1189 = vmatprep.subr.bf16.mxu0 0
          %1190 = vmatpush1.bf16.msra.mxu0 %v1178
          %1191 = vmatprep.subr.bf16.mxu0 0
          %1192 = vmatpush1.bf16.msra.mxu0 %v1179
          %1193 = vmatprep.subr.bf16.mxu0 0
          %1194 = vmatpush1.bf16.msra.mxu0 %v1180
          %1195 = vmatprep.subr.bf16.mxu0 0
          %1196 = vmatpush1.bf16.msra.mxu0 %v1181
          %1197 = vmatprep.subr.bf16.mxu0 0
          %1198 = vmatpush1.bf16.msra.mxu0 0
          %1199 = vmatprep.subr.bf16.mxu0 0
          %1200 = vmatpush1.bf16.msra.mxu0 0
          %1201 = vmatprep.subr.bf16.mxu0 0
          %1202 = vmatpush1.bf16.msra.mxu0 0
          %1203 = vmatprep.subr.bf16.mxu0 0
          %1204 = vmatpush1.bf16.msra.mxu0 0
          %1205 = vmatprep.subr.bf16.mxu0 0
          %1206 = vmatpush1.bf16.msra.mxu0 0
          %1207 = vmatprep.subr.bf16.mxu0 0
          %1208 = vmatpush1.bf16.msra.mxu0 0
          %1209 = vmatprep.subr.bf16.mxu0 0
          %1210 = vmatpush1.bf16.msra.mxu0 0
          %1211 = vmatprep.subr.bf16.mxu0 0
          %1212 = vmatpush1.bf16.msra.mxu0 0
          %1213 = vmatprep.subr.bf16.mxu0 0
          %1214 = vmatpush1.bf16.msra.mxu0 0
          %1215 = vmatprep.subr.bf16.mxu0 0
          %1216 = vmatpush1.bf16.msra.mxu0 0
          %1217 = vmatprep.subr.bf16.mxu0 0
          %1218 = vmatpush1.bf16.msra.mxu0 0
          %1219 = vmatprep.subr.bf16.mxu0 0
          %1220 = vmatpush1.bf16.msra.mxu0 0
          %1221 = vmatprep.mubr.bf16.mxu0 0
          %1222 = vmatmul.mubr.bf16.gmra.mrb[0].mxu0 %v1187
          %v1223 = vpop.f32.mrb[0].mxu0
          %v1224 = vadd.f32 %v1161, %v1223
          %v1225 = vpop.f32.mrb[0].mxu0
          %v1226 = vpop.f32.mrb[0].mxu0
          %v1227 = vadd.f32 %v1161, %v1226
          %v1228 = vpop.f32.mrb[0].mxu0
          %1229 = vdwg.mxu0
          %v1230 = vmul.f32 %v1224, 0.5
          %v1231 = vmul.f32 %v1227, 0.5
          %v1232 = vmul.f32 %v1224, 0.70710677
          %v1233 = vmul.f32 %v1227, 0.70710677
          %v1234 = vand.u32 2147483647, %v1232
          %v1235 = vand.u32 2147483647, %v1233
          %v1236 = vmul.f32 %v1234, 0.3275911
          %v1237 = vmul.f32 %v1235, 0.3275911
          %v1238 = vadd.f32 %v1236, 1.0
          %v1239 = vadd.f32 %v1237, 1.0
          %v1240 = vrcp.pop %v1238
          %v1241 = vmul.f32 1.0, %v1240
          %v1242 = vrcp.pop %v1239
          %v1243 = vmul.f32 1.0, %v1242
          %v1244 = vmul.f32 %v1241, 1.0614054
          %v1245 = vmul.f32 %v1243, 1.0614054
          %v1246 = vadd.f32 %v1244, -1.4531521
          %v1247 = vadd.f32 %v1245, -1.4531521
          %v1248 = vmul.f32 %v1246, %v1241
          %v1249 = vmul.f32 %v1247, %v1243
          %v1250 = vadd.f32 %v1248, 1.4214138
          %v1251 = vadd.f32 %v1249, 1.4214138
          %v1252 = vmul.f32 %v1250, %v1241
          %v1253 = vmul.f32 %v1251, %v1243
          %v1254 = vadd.f32 %v1252, -0.28449672
          %v1255 = vadd.f32 %v1253, -0.28449672
          %v1256 = vmul.f32 %v1254, %v1241
          %v1257 = vmul.f32 %v1255, %v1243
          %v1258 = vadd.f32 %v1256, 0.2548296
          %v1259 = vadd.f32 %v1257, 0.2548296
          %v1260 = vmul.f32 %v1258, %v1241
          %v1261 = vmul.f32 %v1259, %v1243
          %v1262 = vsub.f32 0.0, %v1234
          %v1263 = vsub.f32 0.0, %v1235
          %v1264 = vmul.f32 %v1262, %v1234
          %v1265 = vmul.f32 %v1263, %v1235
          %v1266 = vmul.f32 %v1264, 1.442695
          %v1267 = vpow.pop %v1266
          %v1268 = vmul.f32 %v1265, 1.442695
          %v1269 = vpow.pop %v1268
          %v1270 = vmul.f32 %v1260, %v1267
          %v1271 = vmul.f32 %v1261, %v1269
          %v1272 = vsub.f32 1.0, %v1270
          %v1273 = vsub.f32 1.0, %v1271
          %vm1274 = vcmp.ge.f32.partialorder %v1232, 0.0
          %vm1275 = vcmp.ge.f32.partialorder %v1233, 0.0
          %v1276 = vsub.f32 0.0, %v1272
          %v1277 = vsub.f32 0.0, %v1273
          %v1278 = vsel %vm1274, %v1272, %v1276
          %v1279 = vsel %vm1275, %v1273, %v1277
          %v1280 = vadd.f32 %v1278, 1.0
          %v1281 = vadd.f32 %v1279, 1.0
          %v1282 = vmul.f32 %v1230, %v1280
          %v1283 = vmul.f32 %v1231, %v1281
          %v1284 = vpack.c.bf16 %v1283, %v1282
          %v1285 = vlaneseq
          %v1286 = vshrl.u32 %v1285, 7
          %v1287 = vsub.s32 4, %v1286
          %v1288 = vrot.slane %v1041, %v1287
          %v1297 = vunpack.c.l.b16 %v1033
          %v1298 = vunpack.c.l.b16 %v1034
          %v1299 = vunpack.c.l.b16 %v1035
          %v1300 = vunpack.c.l.b16 %v1036
          %v1301 = vunpack.c.l.b16 %v1037
          %v1302 = vunpack.c.l.b16 %v1038
          %v1303 = vunpack.c.l.b16 %v1039
          %v1304 = vunpack.c.l.b16 %v1040
          %v1305 = vpack.c.b16 %v1298, %v1297
          %v1306 = vpack.c.b16 %v1300, %v1299
          %v1307 = vpack.c.b16 %v1302, %v1301
          %v1308 = vpack.c.b16 %v1304, %v1303
          %v1314 = vsel %vm879, %v1284, 0
          %1316 = vmatprep.subr.bf16.mxu0 0
          %1317 = vmatpush1.bf16.msra.mxu0 %v1305
          %1318 = vmatprep.subr.bf16.mxu0 0
          %1319 = vmatpush1.bf16.msra.mxu0 %v1306
          %1320 = vmatprep.subr.bf16.mxu0 0
          %1321 = vmatpush1.bf16.msra.mxu0 %v1307
          %1322 = vmatprep.subr.bf16.mxu0 0
          %1323 = vmatpush1.bf16.msra.mxu0 %v1308
          %1324 = vmatprep.subr.bf16.mxu0 0
          %1325 = vmatpush1.bf16.msra.mxu0 0
          %1326 = vmatprep.subr.bf16.mxu0 0
          %1327 = vmatpush1.bf16.msra.mxu0 0
          %1328 = vmatprep.subr.bf16.mxu0 0
          %1329 = vmatpush1.bf16.msra.mxu0 0
          %1330 = vmatprep.subr.bf16.mxu0 0
          %1331 = vmatpush1.bf16.msra.mxu0 0
          %1332 = vmatprep.subr.bf16.mxu0 0
          %1333 = vmatpush1.bf16.msra.mxu0 0
          %1334 = vmatprep.subr.bf16.mxu0 0
          %1335 = vmatpush1.bf16.msra.mxu0 0
          %1336 = vmatprep.subr.bf16.mxu0 0
          %1337 = vmatpush1.bf16.msra.mxu0 0
          %1338 = vmatprep.subr.bf16.mxu0 0
          %1339 = vmatpush1.bf16.msra.mxu0 0
          %1340 = vmatprep.subr.bf16.mxu0 0
          %1341 = vmatpush1.bf16.msra.mxu0 0
          %1342 = vmatprep.subr.bf16.mxu0 0
          %1343 = vmatpush1.bf16.msra.mxu0 0
          %1344 = vmatprep.subr.bf16.mxu0 0
          %1345 = vmatpush1.bf16.msra.mxu0 0
          %1346 = vmatprep.subr.bf16.mxu0 0
          %1347 = vmatpush1.bf16.msra.mxu0 0
          %1348 = vmatprep.mubr.bf16.mxu0 0
          %1349 = vmatmul.mubr.bf16.gmra.mrb[0].mxu0 %v1314
          %v1350 = vpop.f32.mrb[0].mxu0
          %v1351 = vadd.f32 %v1288, %v1350
          %v1352 = vpop.f32.mrb[0].mxu0
          %v1353 = vpop.f32.mrb[0].mxu0
          %v1354 = vadd.f32 %v1288, %v1353
          %v1355 = vpop.f32.mrb[0].mxu0
          %1356 = vdwg.mxu0
          %v1357 = vadd.f32 %v1115, %v1351
          %v1358 = vadd.f32 %v1116, %v1354
          %v1359 = vpack.c.bf16 %v1358, %v1357
          %v1361 = vunpack.c.l.b16 %v1359
          %v1362 = vunpack.c.h.b16 %v1359
          %v1363 = vpack.c.b16 %v1361, %v1361
          %v1364 = vpack.c.b16 %v1362, %v1362
          %vm1367 = vcmask 519168
          %1368 = vst.msk [vmem:[%s295] sm:$0xf] %vm1367, %v1363
          %1369 = vst.msk [vmem:[%s295 + $0x4] sm:$0xf] %vm1367, %v1364
        $region60: #{tpu_custom_call.1} parent=43 // pred_fallthru
          _
        %s1370 = sand.u32 %s185, 1
        %s1371 = scalar_lea.sflag [#allocation6], %s1370
        %s1372 = sand.u32 %s185, 1
        %s1373 = smul.addr %s1372, 8
        %s1374 = scalar_lea.vmem [#allocation7], %s1373
        // Predicated region
        $region61: #{tpu_custom_call.1} parent=43 // pred_check
          %p1375 = pneg %p195
        $region62: #{tpu_custom_call.1} parent=43 // pred_check_branch
          %1377 = sbr.rel (%p1375) target = $region64
        $region63: #{tpu_custom_call.1} parent=43 // pred_region
          %s1378 = smul.u32 %s28, %s27
          %s1379 = smul.u32 2, %s1378
          %s1381 = ssub.s32 128, 128
          %1382 = vsyncadd %s1371, %s1381
          %s1383 = smul.addr %s26, 2
          %s1384 = sadd.s32 %s1379, %s1383
          %s1385 = smul.addr %s1384, 64
          %s1386 = scalar_lea.hbm %s6, %s1385
          %s1387 = sshll.u32 %s1374, 4
          %s1388 = int_to_ptr.vmem [resolvable:$true] %s1387
          %1393 = dma.vmem_to_hbm [thread:$0]  %s1388, 128, %s1386, %s1371, 64, 64, 4
        $region64: #{tpu_custom_call.1} parent=43 // pred_fallthru
          _
      $region44: #{tpu_custom_call.1} parent=5 // pred_fallthru
        _
      %p1394 = scmp.le.s32.totalorder 2, %s16
      // Predicated region
      $region65: #{tpu_custom_call.1} parent=5 // pred_check
        %p1395 = pneg %p1394
      $region66: #{tpu_custom_call.1} parent=5 // pred_check_branch
        %1397 = sbr.rel (%p1395) target = $region68
      $region67: #{tpu_custom_call.1} parent=5 // pred_region
        %s1398 = ssub.s32 %s16, 2
        // Predicated region
        $region69: #{tpu_custom_call.1} parent=67 // pred_check
          %p1399 = pneg %p201
        $region70: #{tpu_custom_call.1} parent=67 // pred_check_branch
          %1401 = sbr.rel (%p1399) target = $region72
        $region71: #{tpu_custom_call.1} parent=67 // pred_region
          %s1402 = sand.u32 %s186, 1
          %s1403 = scalar_lea.sflag [#allocation6], %s1402
          %s1404 = sand.u32 %s186, 1
          %s1405 = smul.addr %s1404, 8
          %s1406 = scalar_lea.vmem [#allocation7], %s1405
          %1407 = dma.done %s1403, 128
        $region72: #{tpu_custom_call.1} parent=67 // pred_fallthru
          _
      $region68: #{tpu_custom_call.1} parent=5 // pred_fallthru
        _
    $region6: #{tpu_custom_call.1} parent=1 // loop_footer
      %s20 = sadd.s32 1, %s16
    $region7: #{tpu_custom_call.1} parent=1 // loop_footer_branch
      %15 = sbr.rel target = $region3
    $region8: #{tpu_custom_call.1} parent=1 // loop_exit
      _
    %1408 = vsyncpa [#allocation5], 1
    %s1409 = scalar_lea.sflag [#allocation5], 1
    %1410 = vsyncpa %s1409, 1
    %1411 = vsyncpa [#allocation6], 1
    %s1412 = scalar_lea.sflag [#allocation6], 1
    %1413 = vsyncpa %s1412, 1

</llo_original>
